<compile_context>
chip_gen: v6e
topology: v6e:2x2x1
jax: 0.10.0
libtpu: 0.0.40
codegen_flags: <defaults>
</compile_context>

<pallas_src>
import jax
import jax.numpy as jnp
from jax import lax
from jax.experimental import pallas as pl
from jax.experimental.pallas import tpu as pltpu
import numpy as np


def _round_up(x, m):
    return ((x + m - 1) // m) * m


def _pick_tile(total, candidates):
    for c in candidates:
        if total % c == 0:
            return c
    return total


# --------------------------------------------------------------------------
# Kernel A: batched input-side gates + sequential LSTM recurrence -> hs
# --------------------------------------------------------------------------
def lstm_recurrence_kernel(embeds_ref, wih_ref, whh_ref, b_ref, hs_ref, gx_ref):
    """embeds (Tp,Ep) bf16, wih (Ep,4Hp) bf16, whh (Hp,4Hp) bf16, b (1,4Hp) f32
    -> hs (Tp,Hp) f32.  gx_ref is (Tp,4Hp) f32 scratch."""
    Tp = embeds_ref.shape[0]
    Hp = hs_ref.shape[1]

    # Phase 1: batched input-side gates, bf16 MXU operands, f32 accumulation.
    gx_ref[...] = (jnp.dot(embeds_ref[...], wih_ref[...],
                           preferred_element_type=jnp.float32)
                   + b_ref[...])

    # Phase 2: recurrence.  8-step blocks: one full-tile gx load + one
    # full-tile hs store per block; h/c carried in vregs (f32).
    def block_step(bi, carry):
        h, c = carry                                   # (1, Hp) f32 each
        base = pl.multiple_of(bi * 8, 8)
        gx_blk = gx_ref[pl.ds(base, 8), :]             # (8, 4Hp) aligned load
        h_rows = []
        for r in range(8):                             # static unroll = 8
            gates = (gx_blk[r:r + 1, :]
                     + jnp.dot(h.astype(jnp.bfloat16), whh_ref[...],
                               preferred_element_type=jnp.float32))
            i_g = jax.nn.sigmoid(gates[:, 0 * Hp:1 * Hp])
            f_g = jax.nn.sigmoid(gates[:, 1 * Hp:2 * Hp])
            g_g = jnp.tanh(gates[:, 2 * Hp:3 * Hp])
            o_g = jax.nn.sigmoid(gates[:, 3 * Hp:4 * Hp])
            c = f_g * c + i_g * g_g
            h = o_g * jnp.tanh(c)
            h_rows.append(h)
        hs_ref[pl.ds(base, 8), :] = jnp.concatenate(h_rows, axis=0)
        return (h, c)

    h0 = jnp.zeros((1, Hp), jnp.float32)
    c0 = jnp.zeros((1, Hp), jnp.float32)
    lax.fori_loop(0, Tp // 8, block_step, (h0, c0))


# --------------------------------------------------------------------------
# Kernel B: tiled projection + online logsumexp across the vocab axis
# --------------------------------------------------------------------------
def projection_lse_kernel(hs_ref, wlin_ref, blin_ref, logits_ref, lse_ref,
                          m_sc, l_sc):
    j = pl.program_id(1)

    @pl.when(j == 0)
    def _():
        m_sc[...] = jnp.full_like(m_sc, -jnp.inf)
        l_sc[...] = jnp.zeros_like(l_sc)

    hs_b = hs_ref[...].astype(jnp.bfloat16)                       # (tm, Hp)
    logits = (jnp.dot(hs_b, wlin_ref[...],
                      preferred_element_type=jnp.float32)
              + blin_ref[...])                                    # (tm, tn) f32
    logits_ref[...] = logits

    m_prev = m_sc[...]
    m_new = jnp.maximum(m_prev, jnp.max(logits, axis=-1, keepdims=True))
    l_sc[...] = (jnp.exp(m_prev - m_new) * l_sc[...]
                 + jnp.sum(jnp.exp(logits - m_new), axis=-1, keepdims=True))
    m_sc[...] = m_new

    @pl.when(j == pl.num_programs(1) - 1)
    def _():
        lse_ref[...] = m_sc[...] + jnp.log(l_sc[...])


# --------------------------------------------------------------------------
# Kernel C: tiled normalize (log_softmax finalize)
# --------------------------------------------------------------------------
def log_softmax_finalize_kernel(logits_ref, lse_ref, out_ref):
    out_ref[...] = logits_ref[...] - lse_ref[...]


# --------------------------------------------------------------------------
# Weight preparation (lane-aligned padding + bf16 cast).  Run ONCE.
# --------------------------------------------------------------------------
def prepare_weights(params):
    emb = params["embedding"]                    # (V, E)
    w_ih, w_hh = params["w_ih"], params["w_hh"]  # (4H,E), (4H,H)
    b_ih, b_hh = params["b_ih"], params["b_hh"]
    w_lin, b_lin = params["w_lin"], params["b_lin"]

    V, E = emb.shape
    H = w_hh.shape[1]
    Hp = _round_up(H, 128)
    Vp = _round_up(V, 128)
    Ep = _round_up(E, 128)

    emb_p = jnp.pad(emb.astype(jnp.float32),
                    ((0, 0), (0, Ep - E))).astype(jnp.bfloat16)     # (V, Ep)

    wih_g = jnp.pad(w_ih.reshape(4, H, E).astype(jnp.float32),
                    ((0, 0), (0, Hp - H), (0, Ep - E)))             # (4,Hp,Ep)
    wih_t = jnp.transpose(wih_g, (2, 0, 1)).reshape(Ep, 4 * Hp)
    wih_t = wih_t.astype(jnp.bfloat16)                              # (Ep,4Hp)

    whh_g = jnp.pad(w_hh.reshape(4, H, H).astype(jnp.float32),
                    ((0, 0), (0, Hp - H), (0, Hp - H)))             # (4,Hp,Hp)
    whh_t = jnp.transpose(whh_g, (2, 0, 1)).reshape(Hp, 4 * Hp)
    whh_t = whh_t.astype(jnp.bfloat16)                              # (Hp,4Hp)

    b_g = jnp.pad((b_ih + b_hh).reshape(4, H).astype(jnp.float32),
                  ((0, 0), (0, Hp - H)))
    b = b_g.reshape(1, 4 * Hp)                                      # (1,4Hp) f32

    wlin_t = jnp.pad(w_lin.T.astype(jnp.float32),
                     ((0, Hp - H), (0, Vp - V))).astype(jnp.bfloat16)  # (Hp,Vp)
    blin = jnp.concatenate(
        [b_lin.astype(jnp.float32),
         jnp.full((Vp - V,), -1e30, jnp.float32)]).reshape(1, Vp)   # (1,Vp) f32

    return {"emb": emb_p, "wih": wih_t, "whh": whh_t, "b": b,
            "wlin": wlin_t, "blin": blin}


# --------------------------------------------------------------------------
# Forward pass
# --------------------------------------------------------------------------
def suess_forward(input_ids, w):
    emb, wih, whh, b = w["emb"], w["wih"], w["whh"], w["b"]
    wlin, blin = w["wlin"], w["blin"]

    T = input_ids.shape[0]
    V, Ep = emb.shape
    Hp = whh.shape[0]
    Vp = wlin.shape[1]
    Tp = _round_up(max(T, 8), 8)

    # Embedding gather (plain JAX glue for now; see TODO at top).
    embeds = jnp.take(emb, input_ids, axis=0)            # (T, Ep) bf16
    embeds = jnp.pad(embeds, ((0, Tp - T), (0, 0)))      # (Tp, Ep)

    vmem = pl.BlockSpec(memory_space=pltpu.MemorySpace.VMEM)
    vmem_need = (Tp * Ep * 2 + Ep * 4 * Hp * 2 + Hp * 4 * Hp * 2
                 + 8 * 4 * Hp * 4 + Tp * Hp * 4 + Tp * 4 * Hp * 4)
    vmem_limit = int(min(48 << 20, max(8 << 20, 2 * vmem_need)))

    # --- Kernel A: recurrence -> hidden states ----------------------------
    hs = pl.pallas_call(
        lstm_recurrence_kernel,
        out_shape=jax.ShapeDtypeStruct((Tp, Hp), jnp.float32),
        in_specs=[vmem] * 4,
        out_specs=vmem,
        scratch_shapes=[pltpu.VMEM((Tp, 4 * Hp), jnp.float32)],
        compiler_params=pltpu.CompilerParams(vmem_limit_bytes=vmem_limit),
    )(embeds, wih, whh, b)

    # --- Kernel B: tiled projection + online logsumexp --------------------
    tm = _pick_tile(Tp, (256, 128, 64, 32, 16, 8))
    tn = _pick_tile(Vp, (512, 256, 128))
    grid = (Tp // tm, Vp // tn)

    logits, lse = pl.pallas_call(
        projection_lse_kernel,
        out_shape=(jax.ShapeDtypeStruct((Tp, Vp), jnp.float32),
                   jax.ShapeDtypeStruct((Tp, 1), jnp.float32)),
        grid=grid,
        in_specs=[pl.BlockSpec((tm, Hp), lambda i, j: (i, 0)),
                  pl.BlockSpec((Hp, tn), lambda i, j: (0, j)),
                  pl.BlockSpec((1, tn), lambda i, j: (0, j))],
        out_specs=(pl.BlockSpec((tm, tn), lambda i, j: (i, j)),
                   pl.BlockSpec((tm, 1), lambda i, j: (i, 0))),
        scratch_shapes=[pltpu.VMEM((tm, 1), jnp.float32),
                        pltpu.VMEM((tm, 1), jnp.float32)],
        compiler_params=pltpu.CompilerParams(
            dimension_semantics=("parallel", "arbitrary")),
    )(hs, wlin, blin)

    # --- Kernel C: normalize (log_softmax finalize) ------------------------
    out_pad = pl.pallas_call(
        log_softmax_finalize_kernel,
        out_shape=jax.ShapeDtypeStruct((Tp, Vp), jnp.float32),
        grid=grid,
        in_specs=[pl.BlockSpec((tm, tn), lambda i, j: (i, j)),
                  pl.BlockSpec((tm, 1), lambda i, j: (i, 0))],
        out_specs=pl.BlockSpec((tm, tn), lambda i, j: (i, j)),
        compiler_params=pltpu.CompilerParams(
            dimension_semantics=("parallel", "parallel")),
    )(logits, lse)

    return out_pad[:T, :V]


# --------------------------------------------------------------------------
# Pure-JAX reference (mirrors torch f32 semantics) for validation
# --------------------------------------------------------------------------
def reference_forward(input_ids, params):
    emb = jnp.take(params["embedding"], input_ids, axis=0)          # (T, E)
    H = params["w_hh"].shape[1]
    wih_t = params["w_ih"].T
    whh_t = params["w_hh"].T
    b = params["b_ih"] + params["b_hh"]

    def step(carry, x_t):
        h, c = carry
        gates = x_t @ wih_t + h @ whh_t + b
        i = jax.nn.sigmoid(gates[0 * H:1 * H])
        f = jax.nn.sigmoid(gates[1 * H:2 * H])
        g = jnp.tanh(gates[2 * H:3 * H])
        o = jax.nn.sigmoid(gates[3 * H:4 * H])
        c = f * c + i * g
        h = o * jnp.tanh(c)
        return (h, c), h

    h0 = jnp.zeros((H,), jnp.float32)
    (_, _), hs = lax.scan(step, (h0, h0), emb)
    logits = hs @ params["w_lin"].T + params["b_lin"]
    return jax.nn.log_softmax(logits, axis=1)


def init_params(key, embedding_dims, hidden_dims, vocab_size):
    ks = jax.random.split(key, 7)
    scale = 1.0 / np.sqrt(hidden_dims)
    return {
        "embedding": jax.random.normal(ks[0], (vocab_size, embedding_dims),
                                       jnp.float32),
        "w_ih": jax.random.uniform(ks[1], (4 * hidden_dims, embedding_dims),
                                   jnp.float32, -scale, scale),
        "w_hh": jax.random.uniform(ks[2], (4 * hidden_dims, hidden_dims),
                                   jnp.float32, -scale, scale),
        "b_ih": jax.random.uniform(ks[3], (4 * hidden_dims,),
                                   jnp.float32, -scale, scale),
        "b_hh": jax.random.uniform(ks[4], (4 * hidden_dims,),
                                   jnp.float32, -scale, scale),
        "w_lin": jax.random.uniform(ks[5], (vocab_size, hidden_dims),
                                    jnp.float32, -scale, scale),
        "b_lin": jax.random.uniform(ks[6], (vocab_size,),
                                    jnp.float32, -scale, scale),
    }


if __name__ == "__main__":
    embedding_dims, hidden_dims, vocab_size = 32, 32, 64
    seq_len = 8

    key = jax.random.PRNGKey(0)
    pkey, ikey = jax.random.split(key)
    params = init_params(pkey, embedding_dims, hidden_dims, vocab_size)
    input_ids = jax.random.randint(ikey, (seq_len,), 0, vocab_size, jnp.int32)

    prepped = jax.tree_util.tree_map(jax.block_until_ready,
                                     prepare_weights(params))  # once, hoisted
    fwd = jax.jit(suess_forward)

    out = jax.block_until_ready(fwd(input_ids, prepped))
    ref = jax.block_until_ready(reference_forward(input_ids, params))

    # bf16 MXU operands (per perf review) -> compare against the f32 torch-
    # semantics reference with a bf16-appropriate tolerance.
    np.testing.assert_allclose(np.asarray(out), np.asarray(ref),
                               rtol=3e-2, atol=3e-2)
    assert out.shape == (seq_len, vocab_size)
    print("KERNEL_OK")
</pallas_src>

<mosaic_0001>
module attributes {stable_mosaic.version = 11 : i64} {
  func.func @log_softmax_finalize_kernel(%arg0: i32, %arg1: i32, %arg2: memref<8x128xf32, #tpu.memory_space<vmem>>, %arg3: memref<8x1xf32, #tpu.memory_space<vmem>>, %arg4: memref<8x128xf32, #tpu.memory_space<vmem>>) attributes {dimension_semantics = [#tpu.dimension_semantics<parallel>, #tpu.dimension_semantics<parallel>], iteration_bounds = array<i64: 1, 1>, scalar_prefetch = 0 : i64, scratch_operands = 0 : i64, tpu.core_type = #tpu.core_type<tc>, window_params = [{transform_indices = @transform_0, window_bounds = array<i64: 8, 128>}, {transform_indices = @transform_1, window_bounds = array<i64: 8, 1>}, {transform_indices = @transform_2, window_bounds = array<i64: 8, 128>}]} {
    %c0 = arith.constant 0 : index
    %c0_0 = arith.constant 0 : index
    %0 = vector.load %arg2[%c0, %c0_0] : memref<8x128xf32, #tpu.memory_space<vmem>>, vector<8x128xf32>
    %c0_1 = arith.constant 0 : index
    %c0_2 = arith.constant 0 : index
    %1 = vector.load %arg3[%c0_1, %c0_2] : memref<8x1xf32, #tpu.memory_space<vmem>>, vector<8x1xf32>
    %2 = vector.broadcast %1 : vector<8x1xf32> to vector<8x128xf32>
    %3 = arith.subf %0, %2 : vector<8x128xf32>
    %c0_3 = arith.constant 0 : index
    %c0_4 = arith.constant 0 : index
    %4 = vector.load %arg4[%c0_3, %c0_4] : memref<8x128xf32, #tpu.memory_space<vmem>>, vector<8x128xf32>
    tpu.vector_store %arg4[%c0_3, %c0_4], %3 {strides = array<i32>} : memref<8x128xf32, #tpu.memory_space<vmem>>, vector<8x128xf32>,
    return
  }
  func.func @transform_0(%arg0: i32, %arg1: i32) -> (i32, i32) {
    %c0_i32 = arith.constant 0 : i32
    return %arg0, %arg1 : i32, i32
  }
  func.func @transform_1(%arg0: i32, %arg1: i32) -> (i32, i32) {
    %c0_i32 = arith.constant 0 : i32
    %c0_i32_0 = arith.constant 0 : i32
    return %arg0, %c0_i32 : i32, i32
  }
  func.func @transform_2(%arg0: i32, %arg1: i32) -> (i32, i32) {
    %c0_i32 = arith.constant 0 : i32
    return %arg0, %arg1 : i32, i32
  }
}

module attributes {stable_mosaic.version = 11 : i64} {
  func.func @projection_lse_kernel(%arg0: i32, %arg1: i32, %arg2: memref<8x128xf32, #tpu.memory_space<vmem>>, %arg3: memref<128x128xbf16, #tpu.memory_space<vmem>>, %arg4: memref<1x128xf32, #tpu.memory_space<vmem>>, %arg5: memref<8x128xf32, #tpu.memory_space<vmem>>, %arg6: memref<8x1xf32, #tpu.memory_space<vmem>>, %arg7: memref<8x1xf32, #tpu.memory_space<vmem>>, %arg8: memref<8x1xf32, #tpu.memory_space<vmem>>) attributes {dimension_semantics = [#tpu.dimension_semantics<parallel>, #tpu.dimension_semantics<arbitrary>], iteration_bounds = array<i64: 1, 1>, scalar_prefetch = 0 : i64, scratch_operands = 2 : i64, tpu.core_type = #tpu.core_type<tc>, window_params = [{transform_indices = @transform_0, window_bounds = array<i64: 8, 128>}, {transform_indices = @transform_1, window_bounds = array<i64: 128, 128>}, {transform_indices = @transform_2, window_bounds = array<i64: 1, 128>}, {transform_indices = @transform_3, window_bounds = array<i64: 8, 128>}, {transform_indices = @transform_4, window_bounds = array<i64: 8, 1>}]} {
    %c0_i32 = arith.constant 0 : i32
    %0 = arith.cmpi eq, %arg1, %c0_i32 : i32
    %1 = arith.extui %0 : i1 to i32
    %c0_i32_0 = arith.constant 0 : i32
    %2 = arith.cmpi ne, %1, %c0_i32_0 : i32
    scf.if %2 {
      %cst_20 = arith.constant 0xFF800000 : f32
      %30 = vector.broadcast %cst_20 : f32 to vector<8x1xf32>
      %c0_21 = arith.constant 0 : index
      %c0_22 = arith.constant 0 : index
      %31 = vector.load %arg7[%c0_21, %c0_22] : memref<8x1xf32, #tpu.memory_space<vmem>>, vector<8x1xf32>
      tpu.vector_store %arg7[%c0_21, %c0_22], %30 {strides = array<i32>} : memref<8x1xf32, #tpu.memory_space<vmem>>, vector<8x1xf32>,
      %cst_23 = arith.constant 0.000000e+00 : f32
      %32 = vector.broadcast %cst_23 : f32 to vector<8x1xf32>
      %c0_24 = arith.constant 0 : index
      %c0_25 = arith.constant 0 : index
      %33 = vector.load %arg8[%c0_24, %c0_25] : memref<8x1xf32, #tpu.memory_space<vmem>>, vector<8x1xf32>
      tpu.vector_store %arg8[%c0_24, %c0_25], %32 {strides = array<i32>} : memref<8x1xf32, #tpu.memory_space<vmem>>, vector<8x1xf32>,
    } else {
    }
    %c0 = arith.constant 0 : index
    %c0_1 = arith.constant 0 : index
    %3 = vector.load %arg2[%c0, %c0_1] : memref<8x128xf32, #tpu.memory_space<vmem>>, vector<8x128xf32>
    %4 = arith.truncf %3 : vector<8x128xf32> to vector<8x128xbf16>
    %c0_2 = arith.constant 0 : index
    %c0_3 = arith.constant 0 : index
    %5 = vector.load %arg3[%c0_2, %c0_3] : memref<128x128xbf16, #tpu.memory_space<vmem>>, vector<128x128xbf16>
    %cst = arith.constant dense<0.000000e+00> : vector<8x128xf32>
    %6 = tpu.matmul %4, %5, %cst {dimension_numbers = #tpu.dot_dimension_numbers<[1], [0], [0], [1], [0, 0, 1, 1], [], []>} : vector<8x128xbf16>, vector<128x128xbf16>, vector<8x128xf32> -> vector<8x128xf32>
    %c0_4 = arith.constant 0 : index
    %c0_5 = arith.constant 0 : index
    %7 = vector.load %arg4[%c0_4, %c0_5] : memref<1x128xf32, #tpu.memory_space<vmem>>, vector<1x128xf32>
    %8 = vector.broadcast %7 : vector<1x128xf32> to vector<8x128xf32>
    %9 = arith.addf %6, %8 : vector<8x128xf32>
    %c0_6 = arith.constant 0 : index
    %c0_7 = arith.constant 0 : index
    %10 = vector.load %arg5[%c0_6, %c0_7] : memref<8x128xf32, #tpu.memory_space<vmem>>, vector<8x128xf32>
    tpu.vector_store %arg5[%c0_6, %c0_7], %9 {strides = array<i32>} : memref<8x128xf32, #tpu.memory_space<vmem>>, vector<8x128xf32>,
    %c0_8 = arith.constant 0 : index
    %c0_9 = arith.constant 0 : index
    %11 = vector.load %arg7[%c0_8, %c0_9] : memref<8x1xf32, #tpu.memory_space<vmem>>, vector<8x1xf32>
    %cst_10 = arith.constant dense<0xFF800000> : vector<8xf32>
    %12 = vector.multi_reduction <maximumf>, %9, %cst_10 [1] : vector<8x128xf32> to vector<8xf32>
    %13 = vector.shape_cast %12 : vector<8xf32> to vector<8x1xf32>
    %14 = arith.maximumf %11, %13 : vector<8x1xf32>
    %15 = arith.subf %11, %14 : vector<8x1xf32>
    %16 = math.exp %15 : vector<8x1xf32>
    %c0_11 = arith.constant 0 : index
    %c0_12 = arith.constant 0 : index
    %17 = vector.load %arg8[%c0_11, %c0_12] : memref<8x1xf32, #tpu.memory_space<vmem>>, vector<8x1xf32>
    %18 = arith.mulf %16, %17 : vector<8x1xf32>
    %19 = vector.broadcast %14 : vector<8x1xf32> to vector<8x128xf32>
    %20 = arith.subf %9, %19 : vector<8x128xf32>
    %21 = math.exp %20 : vector<8x128xf32>
    %cst_13 = arith.constant dense<0.000000e+00> : vector<8xf32>
    %22 = vector.multi_reduction <add>, %21, %cst_13 [1] : vector<8x128xf32> to vector<8xf32>
    %23 = vector.shape_cast %22 : vector<8xf32> to vector<8x1xf32>
    %24 = arith.addf %18, %23 : vector<8x1xf32>
    %c0_14 = arith.constant 0 : index
    %c0_15 = arith.constant 0 : index
    %25 = vector.load %arg8[%c0_14, %c0_15] : memref<8x1xf32, #tpu.memory_space<vmem>>, vector<8x1xf32>
    tpu.vector_store %arg8[%c0_14, %c0_15], %24 {strides = array<i32>} : memref<8x1xf32, #tpu.memory_space<vmem>>, vector<8x1xf32>,
    %c0_16 = arith.constant 0 : index
    %c0_17 = arith.constant 0 : index
    %26 = vector.load %arg7[%c0_16, %c0_17] : memref<8x1xf32, #tpu.memory_space<vmem>>, vector<8x1xf32>
    tpu.vector_store %arg7[%c0_16, %c0_17], %14 {strides = array<i32>} : memref<8x1xf32, #tpu.memory_space<vmem>>, vector<8x1xf32>,
    %c0_i32_18 = arith.constant 0 : i32
    %27 = arith.cmpi eq, %arg1, %c0_i32_18 : i32
    %28 = arith.extui %27 : i1 to i32
    %c0_i32_19 = arith.constant 0 : i32
    %29 = arith.cmpi ne, %28, %c0_i32_19 : i32
    scf.if %29 {
      %c0_20 = arith.constant 0 : index
      %c0_21 = arith.constant 0 : index
      %30 = vector.load %arg7[%c0_20, %c0_21] : memref<8x1xf32, #tpu.memory_space<vmem>>, vector<8x1xf32>
      %c0_22 = arith.constant 0 : index
      %c0_23 = arith.constant 0 : index
      %31 = vector.load %arg8[%c0_22, %c0_23] : memref<8x1xf32, #tpu.memory_space<vmem>>, vector<8x1xf32>
      %32 = math.log %31 : vector<8x1xf32>
      %33 = arith.addf %30, %32 : vector<8x1xf32>
      %c0_24 = arith.constant 0 : index
      %c0_25 = arith.constant 0 : index
      %34 = vector.load %arg6[%c0_24, %c0_25] : memref<8x1xf32, #tpu.memory_space<vmem>>, vector<8x1xf32>
      tpu.vector_store %arg6[%c0_24, %c0_25], %33 {strides = array<i32>} : memref<8x1xf32, #tpu.memory_space<vmem>>, vector<8x1xf32>,
    } else {
    }
    return
  }
  func.func @transform_0(%arg0: i32, %arg1: i32) -> (i32, i32) {
    %c0_i32 = arith.constant 0 : i32
    %c0_i32_0 = arith.constant 0 : i32
    return %arg0, %c0_i32 : i32, i32
  }
  func.func @transform_1(%arg0: i32, %arg1: i32) -> (i32, i32) {
    %c0_i32 = arith.constant 0 : i32
    %c0_i32_0 = arith.constant 0 : i32
    return %c0_i32, %arg1 : i32, i32
  }
  func.func @transform_2(%arg0: i32, %arg1: i32) -> (i32, i32) {
    %c0_i32 = arith.constant 0 : i32
    %c0_i32_0 = arith.constant 0 : i32
    return %c0_i32, %arg1 : i32, i32
  }
  func.func @transform_3(%arg0: i32, %arg1: i32) -> (i32, i32) {
    %c0_i32 = arith.constant 0 : i32
    return %arg0, %arg1 : i32, i32
  }
  func.func @transform_4(%arg0: i32, %arg1: i32) -> (i32, i32) {
    %c0_i32 = arith.constant 0 : i32
    %c0_i32_0 = arith.constant 0 : i32
    return %arg0, %c0_i32 : i32, i32
  }
}

module attributes {stable_mosaic.version = 11 : i64} {
  func.func @lstm_recurrence_kernel(%arg0: memref<8x128xbf16, #tpu.memory_space<vmem>>, %arg1: memref<128x512xbf16, #tpu.memory_space<vmem>>, %arg2: memref<128x512xbf16, #tpu.memory_space<vmem>>, %arg3: memref<1x512xf32, #tpu.memory_space<vmem>>, %arg4: memref<8x128xf32, #tpu.memory_space<vmem>>, %arg5: memref<8x512xf32, #tpu.memory_space<vmem>>) attributes {dimension_semantics = [], scalar_prefetch = 0 : i64, scratch_operands = 1 : i64, tpu.core_type = #tpu.core_type<tc>} {
    %c0 = arith.constant 0 : index
    %c0_0 = arith.constant 0 : index
    %0 = vector.load %arg0[%c0, %c0_0] : memref<8x128xbf16, #tpu.memory_space<vmem>>, vector<8x128xbf16>
    %c0_1 = arith.constant 0 : index
    %c0_2 = arith.constant 0 : index
    %1 = vector.load %arg1[%c0_1, %c0_2] : memref<128x512xbf16, #tpu.memory_space<vmem>>, vector<128x512xbf16>
    %cst = arith.constant dense<0.000000e+00> : vector<8x512xf32>
    %2 = tpu.matmul %0, %1, %cst {dimension_numbers = #tpu.dot_dimension_numbers<[1], [0], [0], [1], [0, 0, 1, 1], [], []>} : vector<8x128xbf16>, vector<128x512xbf16>, vector<8x512xf32> -> vector<8x512xf32>
    %c0_3 = arith.constant 0 : index
    %c0_4 = arith.constant 0 : index
    %3 = vector.load %arg3[%c0_3, %c0_4] : memref<1x512xf32, #tpu.memory_space<vmem>>, vector<1x512xf32>
    %4 = vector.broadcast %3 : vector<1x512xf32> to vector<8x512xf32>
    %5 = arith.addf %2, %4 : vector<8x512xf32>
    %c0_5 = arith.constant 0 : index
    %c0_6 = arith.constant 0 : index
    %6 = vector.load %arg5[%c0_5, %c0_6] : memref<8x512xf32, #tpu.memory_space<vmem>>, vector<8x512xf32>
    tpu.vector_store %arg5[%c0_5, %c0_6], %5 {strides = array<i32>} : memref<8x512xf32, #tpu.memory_space<vmem>>, vector<8x512xf32>,
    %cst_7 = arith.constant 0.000000e+00 : f32
    %7 = vector.broadcast %cst_7 : f32 to vector<1x128xf32>
    %cst_8 = arith.constant 0.000000e+00 : f32
    %8 = vector.broadcast %cst_8 : f32 to vector<1x128xf32>
    %c0_i32 = arith.constant 0 : i32
    %c8_i32 = arith.constant 8 : i32
    %9 = arith.muli %c0_i32, %c8_i32 : i32
    %10 = tpu.assume_multiple %9, 8 : i32
    %11 = arith.index_cast %10 : i32 to index
    %c0_9 = arith.constant 0 : index
    %12 = vector.load %arg5[%11, %c0_9] : memref<8x512xf32, #tpu.memory_space<vmem>>, vector<8x512xf32>
    %13 = vector.extract_strided_slice %12 {offsets = [0, 0], sizes = [1, 512], strides = [1, 1]} : vector<8x512xf32> to vector<1x512xf32>
    %14 = arith.truncf %7 : vector<1x128xf32> to vector<1x128xbf16>
    %c0_10 = arith.constant 0 : index
    %c0_11 = arith.constant 0 : index
    %15 = vector.load %arg2[%c0_10, %c0_11] : memref<128x512xbf16, #tpu.memory_space<vmem>>, vector<128x512xbf16>
    %cst_12 = arith.constant dense<0.000000e+00> : vector<1x512xf32>
    %16 = tpu.matmul %14, %15, %cst_12 {dimension_numbers = #tpu.dot_dimension_numbers<[1], [0], [0], [1], [0, 0, 1, 1], [], []>} : vector<1x128xbf16>, vector<128x512xbf16>, vector<1x512xf32> -> vector<1x512xf32>
    %17 = arith.addf %13, %16 : vector<1x512xf32>
    %18 = vector.extract_strided_slice %17 {offsets = [0, 0], sizes = [1, 128], strides = [1, 1]} : vector<1x512xf32> to vector<1x128xf32>
    %19 = arith.negf %18 : vector<1x128xf32>
    %20 = math.exp %19 : vector<1x128xf32>
    %cst_13 = arith.constant 1.000000e+00 : f32
    %21 = vector.broadcast %cst_13 : f32 to vector<1x128xf32>
    %22 = arith.addf %21, %20 : vector<1x128xf32>
    %23 = arith.divf %21, %22 : vector<1x128xf32>
    %24 = vector.extract_strided_slice %17 {offsets = [0, 128], sizes = [1, 128], strides = [1, 1]} : vector<1x512xf32> to vector<1x128xf32>
    %25 = arith.negf %24 : vector<1x128xf32>
    %26 = math.exp %25 : vector<1x128xf32>
    %cst_14 = arith.constant 1.000000e+00 : f32
    %27 = vector.broadcast %cst_14 : f32 to vector<1x128xf32>
    %28 = arith.addf %27, %26 : vector<1x128xf32>
    %29 = arith.divf %27, %28 : vector<1x128xf32>
    %30 = vector.extract_strided_slice %17 {offsets = [0, 256], sizes = [1, 128], strides = [1, 1]} : vector<1x512xf32> to vector<1x128xf32>
    %31 = math.tanh %30 : vector<1x128xf32>
    %32 = vector.extract_strided_slice %17 {offsets = [0, 384], sizes = [1, 128], strides = [1, 1]} : vector<1x512xf32> to vector<1x128xf32>
    %33 = arith.negf %32 : vector<1x128xf32>
    %34 = math.exp %33 : vector<1x128xf32>
    %cst_15 = arith.constant 1.000000e+00 : f32
    %35 = vector.broadcast %cst_15 : f32 to vector<1x128xf32>
    %36 = arith.addf %35, %34 : vector<1x128xf32>
    %37 = arith.divf %35, %36 : vector<1x128xf32>
    %38 = arith.mulf %29, %8 : vector<1x128xf32>
    %39 = arith.mulf %23, %31 : vector<1x128xf32>
    %40 = arith.addf %38, %39 : vector<1x128xf32>
    %41 = math.tanh %40 : vector<1x128xf32>
    %42 = arith.mulf %37, %41 : vector<1x128xf32>
    %43 = vector.extract_strided_slice %12 {offsets = [1, 0], sizes = [1, 512], strides = [1, 1]} : vector<8x512xf32> to vector<1x512xf32>
    %44 = arith.truncf %42 : vector<1x128xf32> to vector<1x128xbf16>
    %c0_16 = arith.constant 0 : index
    %c0_17 = arith.constant 0 : index
    %45 = vector.load %arg2[%c0_16, %c0_17] : memref<128x512xbf16, #tpu.memory_space<vmem>>, vector<128x512xbf16>
    %cst_18 = arith.constant dense<0.000000e+00> : vector<1x512xf32>
    %46 = tpu.matmul %44, %45, %cst_18 {dimension_numbers = #tpu.dot_dimension_numbers<[1], [0], [0], [1], [0, 0, 1, 1], [], []>} : vector<1x128xbf16>, vector<128x512xbf16>, vector<1x512xf32> -> vector<1x512xf32>
    %47 = arith.addf %43, %46 : vector<1x512xf32>
    %48 = vector.extract_strided_slice %47 {offsets = [0, 0], sizes = [1, 128], strides = [1, 1]} : vector<1x512xf32> to vector<1x128xf32>
    %49 = arith.negf %48 : vector<1x128xf32>
    %50 = math.exp %49 : vector<1x128xf32>
    %cst_19 = arith.constant 1.000000e+00 : f32
    %51 = vector.broadcast %cst_19 : f32 to vector<1x128xf32>
    %52 = arith.addf %51, %50 : vector<1x128xf32>
    %53 = arith.divf %51, %52 : vector<1x128xf32>
    %54 = vector.extract_strided_slice %47 {offsets = [0, 128], sizes = [1, 128], strides = [1, 1]} : vector<1x512xf32> to vector<1x128xf32>
    %55 = arith.negf %54 : vector<1x128xf32>
    %56 = math.exp %55 : vector<1x128xf32>
    %cst_20 = arith.constant 1.000000e+00 : f32
    %57 = vector.broadcast %cst_20 : f32 to vector<1x128xf32>
    %58 = arith.addf %57, %56 : vector<1x128xf32>
    %59 = arith.divf %57, %58 : vector<1x128xf32>
    %60 = vector.extract_strided_slice %47 {offsets = [0, 256], sizes = [1, 128], strides = [1, 1]} : vector<1x512xf32> to vector<1x128xf32>
    %61 = math.tanh %60 : vector<1x128xf32>
    %62 = vector.extract_strided_slice %47 {offsets = [0, 384], sizes = [1, 128], strides = [1, 1]} : vector<1x512xf32> to vector<1x128xf32>
    %63 = arith.negf %62 : vector<1x128xf32>
    %64 = math.exp %63 : vector<1x128xf32>
    %cst_21 = arith.constant 1.000000e+00 : f32
    %65 = vector.broadcast %cst_21 : f32 to vector<1x128xf32>
    %66 = arith.addf %65, %64 : vector<1x128xf32>
    %67 = arith.divf %65, %66 : vector<1x128xf32>
    %68 = arith.mulf %59, %40 : vector<1x128xf32>
    %69 = arith.mulf %53, %61 : vector<1x128xf32>
    %70 = arith.addf %68, %69 : vector<1x128xf32>
    %71 = math.tanh %70 : vector<1x128xf32>
    %72 = arith.mulf %67, %71 : vector<1x128xf32>
    %73 = vector.extract_strided_slice %12 {offsets = [2, 0], sizes = [1, 512], strides = [1, 1]} : vector<8x512xf32> to vector<1x512xf32>
    %74 = arith.truncf %72 : vector<1x128xf32> to vector<1x128xbf16>
    %c0_22 = arith.constant 0 : index
    %c0_23 = arith.constant 0 : index
    %75 = vector.load %arg2[%c0_22, %c0_23] : memref<128x512xbf16, #tpu.memory_space<vmem>>, vector<128x512xbf16>
    %cst_24 = arith.constant dense<0.000000e+00> : vector<1x512xf32>
    %76 = tpu.matmul %74, %75, %cst_24 {dimension_numbers = #tpu.dot_dimension_numbers<[1], [0], [0], [1], [0, 0, 1, 1], [], []>} : vector<1x128xbf16>, vector<128x512xbf16>, vector<1x512xf32> -> vector<1x512xf32>
    %77 = arith.addf %73, %76 : vector<1x512xf32>
    %78 = vector.extract_strided_slice %77 {offsets = [0, 0], sizes = [1, 128], strides = [1, 1]} : vector<1x512xf32> to vector<1x128xf32>
    %79 = arith.negf %78 : vector<1x128xf32>
    %80 = math.exp %79 : vector<1x128xf32>
    %cst_25 = arith.constant 1.000000e+00 : f32
    %81 = vector.broadcast %cst_25 : f32 to vector<1x128xf32>
    %82 = arith.addf %81, %80 : vector<1x128xf32>
    %83 = arith.divf %81, %82 : vector<1x128xf32>
    %84 = vector.extract_strided_slice %77 {offsets = [0, 128], sizes = [1, 128], strides = [1, 1]} : vector<1x512xf32> to vector<1x128xf32>
    %85 = arith.negf %84 : vector<1x128xf32>
    %86 = math.exp %85 : vector<1x128xf32>
    %cst_26 = arith.constant 1.000000e+00 : f32
    %87 = vector.broadcast %cst_26 : f32 to vector<1x128xf32>
    %88 = arith.addf %87, %86 : vector<1x128xf32>
    %89 = arith.divf %87, %88 : vector<1x128xf32>
    %90 = vector.extract_strided_slice %77 {offsets = [0, 256], sizes = [1, 128], strides = [1, 1]} : vector<1x512xf32> to vector<1x128xf32>
    %91 = math.tanh %90 : vector<1x128xf32>
    %92 = vector.extract_strided_slice %77 {offsets = [0, 384], sizes = [1, 128], strides = [1, 1]} : vector<1x512xf32> to vector<1x128xf32>
    %93 = arith.negf %92 : vector<1x128xf32>
    %94 = math.exp %93 : vector<1x128xf32>
    %cst_27 = arith.constant 1.000000e+00 : f32
    %95 = vector.broadcast %cst_27 : f32 to vector<1x128xf32>
    %96 = arith.addf %95, %94 : vector<1x128xf32>
    %97 = arith.divf %95, %96 : vector<1x128xf32>
    %98 = arith.mulf %89, %70 : vector<1x128xf32>
    %99 = arith.mulf %83, %91 : vector<1x128xf32>
    %100 = arith.addf %98, %99 : vector<1x128xf32>
    %101 = math.tanh %100 : vector<1x128xf32>
    %102 = arith.mulf %97, %101 : vector<1x128xf32>
    %103 = vector.extract_strided_slice %12 {offsets = [3, 0], sizes = [1, 512], strides = [1, 1]} : vector<8x512xf32> to vector<1x512xf32>
    %104 = arith.truncf %102 : vector<1x128xf32> to vector<1x128xbf16>
    %c0_28 = arith.constant 0 : index
    %c0_29 = arith.constant 0 : index
    %105 = vector.load %arg2[%c0_28, %c0_29] : memref<128x512xbf16, #tpu.memory_space<vmem>>, vector<128x512xbf16>
    %cst_30 = arith.constant dense<0.000000e+00> : vector<1x512xf32>
    %106 = tpu.matmul %104, %105, %cst_30 {dimension_numbers = #tpu.dot_dimension_numbers<[1], [0], [0], [1], [0, 0, 1, 1], [], []>} : vector<1x128xbf16>, vector<128x512xbf16>, vector<1x512xf32> -> vector<1x512xf32>
    %107 = arith.addf %103, %106 : vector<1x512xf32>
    %108 = vector.extract_strided_slice %107 {offsets = [0, 0], sizes = [1, 128], strides = [1, 1]} : vector<1x512xf32> to vector<1x128xf32>
    %109 = arith.negf %108 : vector<1x128xf32>
    %110 = math.exp %109 : vector<1x128xf32>
    %cst_31 = arith.constant 1.000000e+00 : f32
    %111 = vector.broadcast %cst_31 : f32 to vector<1x128xf32>
    %112 = arith.addf %111, %110 : vector<1x128xf32>
    %113 = arith.divf %111, %112 : vector<1x128xf32>
    %114 = vector.extract_strided_slice %107 {offsets = [0, 128], sizes = [1, 128], strides = [1, 1]} : vector<1x512xf32> to vector<1x128xf32>
    %115 = arith.negf %114 : vector<1x128xf32>
    %116 = math.exp %115 : vector<1x128xf32>
    %cst_32 = arith.constant 1.000000e+00 : f32
    %117 = vector.broadcast %cst_32 : f32 to vector<1x128xf32>
    %118 = arith.addf %117, %116 : vector<1x128xf32>
    %119 = arith.divf %117, %118 : vector<1x128xf32>
    %120 = vector.extract_strided_slice %107 {offsets = [0, 256], sizes = [1, 128], strides = [1, 1]} : vector<1x512xf32> to vector<1x128xf32>
    %121 = math.tanh %120 : vector<1x128xf32>
    %122 = vector.extract_strided_slice %107 {offsets = [0, 384], sizes = [1, 128], strides = [1, 1]} : vector<1x512xf32> to vector<1x128xf32>
    %123 = arith.negf %122 : vector<1x128xf32>
    %124 = math.exp %123 : vector<1x128xf32>
    %cst_33 = arith.constant 1.000000e+00 : f32
    %125 = vector.broadcast %cst_33 : f32 to vector<1x128xf32>
    %126 = arith.addf %125, %124 : vector<1x128xf32>
    %127 = arith.divf %125, %126 : vector<1x128xf32>
    %128 = arith.mulf %119, %100 : vector<1x128xf32>
    %129 = arith.mulf %113, %121 : vector<1x128xf32>
    %130 = arith.addf %128, %129 : vector<1x128xf32>
    %131 = math.tanh %130 : vector<1x128xf32>
    %132 = arith.mulf %127, %131 : vector<1x128xf32>
    %133 = vector.extract_strided_slice %12 {offsets = [4, 0], sizes = [1, 512], strides = [1, 1]} : vector<8x512xf32> to vector<1x512xf32>
    %134 = arith.truncf %132 : vector<1x128xf32> to vector<1x128xbf16>
    %c0_34 = arith.constant 0 : index
    %c0_35 = arith.constant 0 : index
    %135 = vector.load %arg2[%c0_34, %c0_35] : memref<128x512xbf16, #tpu.memory_space<vmem>>, vector<128x512xbf16>
    %cst_36 = arith.constant dense<0.000000e+00> : vector<1x512xf32>
    %136 = tpu.matmul %134, %135, %cst_36 {dimension_numbers = #tpu.dot_dimension_numbers<[1], [0], [0], [1], [0, 0, 1, 1], [], []>} : vector<1x128xbf16>, vector<128x512xbf16>, vector<1x512xf32> -> vector<1x512xf32>
    %137 = arith.addf %133, %136 : vector<1x512xf32>
    %138 = vector.extract_strided_slice %137 {offsets = [0, 0], sizes = [1, 128], strides = [1, 1]} : vector<1x512xf32> to vector<1x128xf32>
    %139 = arith.negf %138 : vector<1x128xf32>
    %140 = math.exp %139 : vector<1x128xf32>
    %cst_37 = arith.constant 1.000000e+00 : f32
    %141 = vector.broadcast %cst_37 : f32 to vector<1x128xf32>
    %142 = arith.addf %141, %140 : vector<1x128xf32>
    %143 = arith.divf %141, %142 : vector<1x128xf32>
    %144 = vector.extract_strided_slice %137 {offsets = [0, 128], sizes = [1, 128], strides = [1, 1]} : vector<1x512xf32> to vector<1x128xf32>
    %145 = arith.negf %144 : vector<1x128xf32>
    %146 = math.exp %145 : vector<1x128xf32>
    %cst_38 = arith.constant 1.000000e+00 : f32
    %147 = vector.broadcast %cst_38 : f32 to vector<1x128xf32>
    %148 = arith.addf %147, %146 : vector<1x128xf32>
    %149 = arith.divf %147, %148 : vector<1x128xf32>
    %150 = vector.extract_strided_slice %137 {offsets = [0, 256], sizes = [1, 128], strides = [1, 1]} : vector<1x512xf32> to vector<1x128xf32>
    %151 = math.tanh %150 : vector<1x128xf32>
    %152 = vector.extract_strided_slice %137 {offsets = [0, 384], sizes = [1, 128], strides = [1, 1]} : vector<1x512xf32> to vector<1x128xf32>
    %153 = arith.negf %152 : vector<1x128xf32>
    %154 = math.exp %153 : vector<1x128xf32>
    %cst_39 = arith.constant 1.000000e+00 : f32
    %155 = vector.broadcast %cst_39 : f32 to vector<1x128xf32>
    %156 = arith.addf %155, %154 : vector<1x128xf32>
    %157 = arith.divf %155, %156 : vector<1x128xf32>
    %158 = arith.mulf %149, %130 : vector<1x128xf32>
    %159 = arith.mulf %143, %151 : vector<1x128xf32>
    %160 = arith.addf %158, %159 : vector<1x128xf32>
    %161 = math.tanh %160 : vector<1x128xf32>
    %162 = arith.mulf %157, %161 : vector<1x128xf32>
    %163 = vector.extract_strided_slice %12 {offsets = [5, 0], sizes = [1, 512], strides = [1, 1]} : vector<8x512xf32> to vector<1x512xf32>
    %164 = arith.truncf %162 : vector<1x128xf32> to vector<1x128xbf16>
    %c0_40 = arith.constant 0 : index
    %c0_41 = arith.constant 0 : index
    %165 = vector.load %arg2[%c0_40, %c0_41] : memref<128x512xbf16, #tpu.memory_space<vmem>>, vector<128x512xbf16>
    %cst_42 = arith.constant dense<0.000000e+00> : vector<1x512xf32>
    %166 = tpu.matmul %164, %165, %cst_42 {dimension_numbers = #tpu.dot_dimension_numbers<[1], [0], [0], [1], [0, 0, 1, 1], [], []>} : vector<1x128xbf16>, vector<128x512xbf16>, vector<1x512xf32> -> vector<1x512xf32>
    %167 = arith.addf %163, %166 : vector<1x512xf32>
    %168 = vector.extract_strided_slice %167 {offsets = [0, 0], sizes = [1, 128], strides = [1, 1]} : vector<1x512xf32> to vector<1x128xf32>
    %169 = arith.negf %168 : vector<1x128xf32>
    %170 = math.exp %169 : vector<1x128xf32>
    %cst_43 = arith.constant 1.000000e+00 : f32
    %171 = vector.broadcast %cst_43 : f32 to vector<1x128xf32>
    %172 = arith.addf %171, %170 : vector<1x128xf32>
    %173 = arith.divf %171, %172 : vector<1x128xf32>
    %174 = vector.extract_strided_slice %167 {offsets = [0, 128], sizes = [1, 128], strides = [1, 1]} : vector<1x512xf32> to vector<1x128xf32>
    %175 = arith.negf %174 : vector<1x128xf32>
    %176 = math.exp %175 : vector<1x128xf32>
    %cst_44 = arith.constant 1.000000e+00 : f32
    %177 = vector.broadcast %cst_44 : f32 to vector<1x128xf32>
    %178 = arith.addf %177, %176 : vector<1x128xf32>
    %179 = arith.divf %177, %178 : vector<1x128xf32>
    %180 = vector.extract_strided_slice %167 {offsets = [0, 256], sizes = [1, 128], strides = [1, 1]} : vector<1x512xf32> to vector<1x128xf32>
    %181 = math.tanh %180 : vector<1x128xf32>
    %182 = vector.extract_strided_slice %167 {offsets = [0, 384], sizes = [1, 128], strides = [1, 1]} : vector<1x512xf32> to vector<1x128xf32>
    %183 = arith.negf %182 : vector<1x128xf32>
    %184 = math.exp %183 : vector<1x128xf32>
    %cst_45 = arith.constant 1.000000e+00 : f32
    %185 = vector.broadcast %cst_45 : f32 to vector<1x128xf32>
    %186 = arith.addf %185, %184 : vector<1x128xf32>
    %187 = arith.divf %185, %186 : vector<1x128xf32>
    %188 = arith.mulf %179, %160 : vector<1x128xf32>
    %189 = arith.mulf %173, %181 : vector<1x128xf32>
    %190 = arith.addf %188, %189 : vector<1x128xf32>
    %191 = math.tanh %190 : vector<1x128xf32>
    %192 = arith.mulf %187, %191 : vector<1x128xf32>
    %193 = vector.extract_strided_slice %12 {offsets = [6, 0], sizes = [1, 512], strides = [1, 1]} : vector<8x512xf32> to vector<1x512xf32>
    %194 = arith.truncf %192 : vector<1x128xf32> to vector<1x128xbf16>
    %c0_46 = arith.constant 0 : index
    %c0_47 = arith.constant 0 : index
    %195 = vector.load %arg2[%c0_46, %c0_47] : memref<128x512xbf16, #tpu.memory_space<vmem>>, vector<128x512xbf16>
    %cst_48 = arith.constant dense<0.000000e+00> : vector<1x512xf32>
    %196 = tpu.matmul %194, %195, %cst_48 {dimension_numbers = #tpu.dot_dimension_numbers<[1], [0], [0], [1], [0, 0, 1, 1], [], []>} : vector<1x128xbf16>, vector<128x512xbf16>, vector<1x512xf32> -> vector<1x512xf32>
    %197 = arith.addf %193, %196 : vector<1x512xf32>
    %198 = vector.extract_strided_slice %197 {offsets = [0, 0], sizes = [1, 128], strides = [1, 1]} : vector<1x512xf32> to vector<1x128xf32>
    %199 = arith.negf %198 : vector<1x128xf32>
    %200 = math.exp %199 : vector<1x128xf32>
    %cst_49 = arith.constant 1.000000e+00 : f32
    %201 = vector.broadcast %cst_49 : f32 to vector<1x128xf32>
    %202 = arith.addf %201, %200 : vector<1x128xf32>
    %203 = arith.divf %201, %202 : vector<1x128xf32>
    %204 = vector.extract_strided_slice %197 {offsets = [0, 128], sizes = [1, 128], strides = [1, 1]} : vector<1x512xf32> to vector<1x128xf32>
    %205 = arith.negf %204 : vector<1x128xf32>
    %206 = math.exp %205 : vector<1x128xf32>
    %cst_50 = arith.constant 1.000000e+00 : f32
    %207 = vector.broadcast %cst_50 : f32 to vector<1x128xf32>
    %208 = arith.addf %207, %206 : vector<1x128xf32>
    %209 = arith.divf %207, %208 : vector<1x128xf32>
    %210 = vector.extract_strided_slice %197 {offsets = [0, 256], sizes = [1, 128], strides = [1, 1]} : vector<1x512xf32> to vector<1x128xf32>
    %211 = math.tanh %210 : vector<1x128xf32>
    %212 = vector.extract_strided_slice %197 {offsets = [0, 384], sizes = [1, 128], strides = [1, 1]} : vector<1x512xf32> to vector<1x128xf32>
    %213 = arith.negf %212 : vector<1x128xf32>
    %214 = math.exp %213 : vector<1x128xf32>
    %cst_51 = arith.constant 1.000000e+00 : f32
    %215 = vector.broadcast %cst_51 : f32 to vector<1x128xf32>
    %216 = arith.addf %215, %214 : vector<1x128xf32>
    %217 = arith.divf %215, %216 : vector<1x128xf32>
    %218 = arith.mulf %209, %190 : vector<1x128xf32>
    %219 = arith.mulf %203, %211 : vector<1x128xf32>
    %220 = arith.addf %218, %219 : vector<1x128xf32>
    %221 = math.tanh %220 : vector<1x128xf32>
    %222 = arith.mulf %217, %221 : vector<1x128xf32>
    %223 = vector.extract_strided_slice %12 {offsets = [7, 0], sizes = [1, 512], strides = [1, 1]} : vector<8x512xf32> to vector<1x512xf32>
    %224 = arith.truncf %222 : vector<1x128xf32> to vector<1x128xbf16>
    %c0_52 = arith.constant 0 : index
    %c0_53 = arith.constant 0 : index
    %225 = vector.load %arg2[%c0_52, %c0_53] : memref<128x512xbf16, #tpu.memory_space<vmem>>, vector<128x512xbf16>
    %cst_54 = arith.constant dense<0.000000e+00> : vector<1x512xf32>
    %226 = tpu.matmul %224, %225, %cst_54 {dimension_numbers = #tpu.dot_dimension_numbers<[1], [0], [0], [1], [0, 0, 1, 1], [], []>} : vector<1x128xbf16>, vector<128x512xbf16>, vector<1x512xf32> -> vector<1x512xf32>
    %227 = arith.addf %223, %226 : vector<1x512xf32>
    %228 = vector.extract_strided_slice %227 {offsets = [0, 0], sizes = [1, 128], strides = [1, 1]} : vector<1x512xf32> to vector<1x128xf32>
    %229 = arith.negf %228 : vector<1x128xf32>
    %230 = math.exp %229 : vector<1x128xf32>
    %cst_55 = arith.constant 1.000000e+00 : f32
    %231 = vector.broadcast %cst_55 : f32 to vector<1x128xf32>
    %232 = arith.addf %231, %230 : vector<1x128xf32>
    %233 = arith.divf %231, %232 : vector<1x128xf32>
    %234 = vector.extract_strided_slice %227 {offsets = [0, 128], sizes = [1, 128], strides = [1, 1]} : vector<1x512xf32> to vector<1x128xf32>
    %235 = arith.negf %234 : vector<1x128xf32>
    %236 = math.exp %235 : vector<1x128xf32>
    %cst_56 = arith.constant 1.000000e+00 : f32
    %237 = vector.broadcast %cst_56 : f32 to vector<1x128xf32>
    %238 = arith.addf %237, %236 : vector<1x128xf32>
    %239 = arith.divf %237, %238 : vector<1x128xf32>
    %240 = vector.extract_strided_slice %227 {offsets = [0, 256], sizes = [1, 128], strides = [1, 1]} : vector<1x512xf32> to vector<1x128xf32>
    %241 = math.tanh %240 : vector<1x128xf32>
    %242 = vector.extract_strided_slice %227 {offsets = [0, 384], sizes = [1, 128], strides = [1, 1]} : vector<1x512xf32> to vector<1x128xf32>
    %243 = arith.negf %242 : vector<1x128xf32>
    %244 = math.exp %243 : vector<1x128xf32>
    %cst_57 = arith.constant 1.000000e+00 : f32
    %245 = vector.broadcast %cst_57 : f32 to vector<1x128xf32>
    %246 = arith.addf %245, %244 : vector<1x128xf32>
    %247 = arith.divf %245, %246 : vector<1x128xf32>
    %248 = arith.mulf %239, %220 : vector<1x128xf32>
    %249 = arith.mulf %233, %241 : vector<1x128xf32>
    %250 = arith.addf %248, %249 : vector<1x128xf32>
    %251 = math.tanh %250 : vector<1x128xf32>
    %252 = arith.mulf %247, %251 : vector<1x128xf32>
    %253 = tpu.concatenate %42, %72, %102, %132, %162, %192, %222, %252 in 0 : vector<1x128xf32>, vector<1x128xf32>, vector<1x128xf32>, vector<1x128xf32>, vector<1x128xf32>, vector<1x128xf32>, vector<1x128xf32>, vector<1x128xf32> -> vector<8x128xf32>
    %254 = arith.index_cast %10 : i32 to index
    %c0_58 = arith.constant 0 : index
    %255 = vector.load %arg4[%254, %c0_58] : memref<8x128xf32, #tpu.memory_space<vmem>>, vector<8x128xf32>
    tpu.vector_store %arg4[%254, %c0_58], %253 {strides = array<i32>} : memref<8x128xf32, #tpu.memory_space<vmem>>, vector<8x128xf32>,
    %c1_i32 = arith.constant 1 : i32
    return
  }
}

</mosaic_0001>

<llo_original>
// kernel: suess_forward.5
$region0: #{suess_forward.5}
  #allocation0 [shape = 'u32[]', space=smem, size = 0x4, offset = 0x4, fixed_abs, tag = 'smem constant byte address 0x4 - core index']
  #allocation1 [shape = 'u32[144,128]{1,0:T(1,128)}', space=vmem, size = 0x12000, scoped, tag = 'internal scratch']
  %s0 = inlined_call_operand.vmem [shape: f32[8,128], index: 0, kind: input, shape index: {}]
  %s1 = inlined_call_operand.vmem [shape: f32[8,1], index: 1, kind: input, shape index: {}]
  %s2 = inlined_call_operand.hbm [shape: f32[8,128], index: 2, kind: output, shape index: {}]
  %s3 = sld [smem:[#allocation0]]
  $region18: #{suess_forward.5} parent=0
    _
  %s5 = ssub.s32 1, %s3
  %s6 = scalar_select 0, %s5, %s3
  $region1: #{suess_forward.5} parent=0
    #allocation2 [shape = 'u8[4096]{0}', space=vmem, size = 0x1000, scoped, tag = 'output window, operand 0, single buffered']
    #allocation3 [shape = 's32[1]{0}', space=sflag, size = 0x4, scoped, tag = 'scoped memory for suess_forward.5']
    %7 = vsyncpa [#allocation3], 0
    // Predicated region
    $region2: #{suess_forward.5} parent=1 // pred_check
      _
    $region3: #{suess_forward.5} parent=1 // pred_check_branch
      %9 = sbr.rel (0) target = $region5
    $region4: #{suess_forward.5} parent=1 // pred_region
      _
    $region5: #{suess_forward.5} parent=1 // pred_fallthru
      _
    // Predicated region
    $region6: #{suess_forward.5} parent=1 // pred_check
      _
    $region7: #{suess_forward.5} parent=1 // pred_check_branch
      %11 = sbr.rel (0) target = $region9
    $region8: #{suess_forward.5} parent=1 // pred_region
      _
    $region9: #{suess_forward.5} parent=1 // pred_fallthru
      _
    %v12 = vld [vmem:[%s0] sm:$0xff]
    %v13 = vld [vmem:[%s1] sm:$0xff]
    %15 = vset.pattern.permute.xlu0 0
    %16 = vperm.xlu0 %15, %v13
    %v17 = vpop.permute.xlu0 %16
    %v19 = vsub.f32 %v12, %v17
    %20 = vst [vmem:[#allocation2] sm:$0xff] %v19
    // Predicated region
    $region10: #{suess_forward.5} parent=1 // pred_check
      _
    $region11: #{suess_forward.5} parent=1 // pred_check_branch
      %22 = sbr.rel (0) target = $region13
    $region12: #{suess_forward.5} parent=1 // pred_region
      %s24 = ssub.s32 128, 128
      %25 = vsyncadd [#allocation3], %s24
      %s27 = sshll.u32 [#allocation2], 4
      %s28 = int_to_ptr.vmem [resolvable:$true] %s27
      %30 = dma.vmem_to_hbm [thread:$0]  %s28, 128, %s2, [#allocation3]
    $region13: #{suess_forward.5} parent=1 // pred_fallthru
      _
    // Predicated region
    $region14: #{suess_forward.5} parent=1 // pred_check
      _
    $region15: #{suess_forward.5} parent=1 // pred_check_branch
      %32 = sbr.rel (0) target = $region17
    $region16: #{suess_forward.5} parent=1 // pred_region
      %33 = dma.done [#allocation3], 128
    $region17: #{suess_forward.5} parent=1 // pred_fallthru
      _
    %34 = vsyncpa [#allocation3], 1

// kernel: suess_forward.4
$region0: #{suess_forward.4}
  #allocation0 [shape = 'u32[]', space=smem, size = 0x4, offset = 0x4, fixed_abs, tag = 'smem constant byte address 0x4 - core index']
  #allocation1 [shape = 'u32[144,128]{1,0:T(1,128)}', space=vmem, size = 0x12000, scoped, tag = 'internal scratch']
  #allocation2 [shape = 'f32[8,1]{1,0:T(8,128)}', space=vmem, size = 0x1000, scoped, tag = 'scratch operand']
  #allocation3 [shape = 'f32[8,1]{1,0:T(8,128)}', space=vmem, size = 0x1000, scoped, tag = 'scratch operand']
  %s0 = inlined_call_operand.vmem [shape: f32[8,128], index: 0, kind: input, shape index: {}]
  %s1 = inlined_call_operand.vmem [shape: bf16[128,128], index: 1, kind: input, shape index: {}]
  %s2 = inlined_call_operand.vmem [shape: f32[1,128], index: 2, kind: input, shape index: {}]
  %s3 = inlined_call_operand.vmem [shape: f32[8,128], index: 3, kind: output, shape index: {0}]
  %s4 = inlined_call_operand.vmem [shape: f32[8,1], index: 4, kind: output, shape index: {1}]
  %5 = xla_tuple %s3, %s4
  %s6 = sld [smem:[#allocation0]]
  $region38: #{suess_forward.4} parent=0
    _
  %s8 = ssub.s32 1, %s6
  %s9 = scalar_select 0, %s8, %s6
  // Predicated region
  $region2: #{suess_forward.4} parent=0 // pred_check
    _
  $region3: #{suess_forward.4} parent=0 // pred_check_branch
    %11 = sbr.rel (0) target = $region5
  $region4: #{suess_forward.4} parent=0 // pred_region
    _
  $region5: #{suess_forward.4} parent=0 // pred_fallthru
    _
  // Predicated region
  $region6: #{suess_forward.4} parent=0 // pred_check
    _
  $region7: #{suess_forward.4} parent=0 // pred_check_branch
    %13 = sbr.rel (0) target = $region9
  $region8: #{suess_forward.4} parent=0 // pred_region
    _
  $region9: #{suess_forward.4} parent=0 // pred_fallthru
    _
  // Predicated region
  $region10: #{suess_forward.4} parent=0 // pred_check
    _
  $region11: #{suess_forward.4} parent=0 // pred_check_branch
    %15 = sbr.rel (0) target = $region13
  $region12: #{suess_forward.4} parent=0 // pred_region
    _
  $region13: #{suess_forward.4} parent=0 // pred_fallthru
    _
  %p17 = scmp.eq.s32.totalorder 0, 0
  // Predicated region
  $region14: #{suess_forward.4} parent=0 // pred_check
    %p18 = pneg %p17
  $region15: #{suess_forward.4} parent=0 // pred_check_branch
    %20 = sbr.rel (%p18) target = $region17
  $region16: #{suess_forward.4} parent=0 // pred_region
    %vm21 = vcmask 7168
    %22 = vst.msk [vmem:[#allocation2] sm:$0xff] %vm21, -inf
    %23 = vst.msk [vmem:[#allocation3] sm:$0xff] %vm21, 0.0
  $region17: #{suess_forward.4} parent=0 // pred_fallthru
    _
  %v24 = vld [vmem:[%s0] sm:$0xff]
  %v25 = vpack.c.bf16 %v24, %v24
  %v26 = vld [vmem:[%s1] sm:$0xf]
  %v27 = vld [vmem:[%s1 + $0x4] sm:$0xf]
  %v28 = vld [vmem:[%s1 + $0x8] sm:$0xf]
  %v29 = vld [vmem:[%s1 + $0xc] sm:$0xf]
  %v30 = vld [vmem:[%s1 + $0x10] sm:$0xf]
  %v31 = vld [vmem:[%s1 + $0x14] sm:$0xf]
  %v32 = vld [vmem:[%s1 + $0x18] sm:$0xf]
  %v33 = vld [vmem:[%s1 + $0x1c] sm:$0xf]
  %v34 = vld [vmem:[%s1 + $0x20] sm:$0xf]
  %v35 = vld [vmem:[%s1 + $0x24] sm:$0xf]
  %v36 = vld [vmem:[%s1 + $0x28] sm:$0xf]
  %v37 = vld [vmem:[%s1 + $0x2c] sm:$0xf]
  %v38 = vld [vmem:[%s1 + $0x30] sm:$0xf]
  %v39 = vld [vmem:[%s1 + $0x34] sm:$0xf]
  %v40 = vld [vmem:[%s1 + $0x38] sm:$0xf]
  %v41 = vld [vmem:[%s1 + $0x3c] sm:$0xf]
  %v42 = vld [vmem:[%s2] sm:$0x1]
  %v44 = vlaneseq
  %v45 = vshrl.u32 %v44, 7
  %v46 = vsub.s32 0, %v45
  %v47 = vrot.slane %v42, %v46
  %v65 = vunpack.c.l.b16 %v26
  %v66 = vunpack.c.l.b16 %v27
  %v67 = vunpack.c.l.b16 %v28
  %v68 = vunpack.c.l.b16 %v29
  %v69 = vunpack.c.l.b16 %v30
  %v70 = vunpack.c.l.b16 %v31
  %v71 = vunpack.c.l.b16 %v32
  %v72 = vunpack.c.l.b16 %v33
  %v73 = vunpack.c.l.b16 %v34
  %v74 = vunpack.c.l.b16 %v35
  %v75 = vunpack.c.l.b16 %v36
  %v76 = vunpack.c.l.b16 %v37
  %v77 = vunpack.c.l.b16 %v38
  %v78 = vunpack.c.l.b16 %v39
  %v79 = vunpack.c.l.b16 %v40
  %v80 = vunpack.c.l.b16 %v41
  %v81 = vpack.c.b16 %v66, %v65
  %v82 = vpack.c.b16 %v68, %v67
  %v83 = vpack.c.b16 %v70, %v69
  %v84 = vpack.c.b16 %v72, %v71
  %v85 = vpack.c.b16 %v74, %v73
  %v86 = vpack.c.b16 %v76, %v75
  %v87 = vpack.c.b16 %v78, %v77
  %v88 = vpack.c.b16 %v80, %v79
  %97 = vmatprep.subr.bf16.mxu0 0
  %98 = vmatpush1.bf16.msra.mxu0 %v88
  %99 = vmatprep.subr.bf16.mxu0 0
  %100 = vmatpush1.bf16.msra.mxu0 %v87
  %101 = vmatprep.subr.bf16.mxu0 0
  %102 = vmatpush1.bf16.msra.mxu0 %v86
  %103 = vmatprep.subr.bf16.mxu0 0
  %104 = vmatpush1.bf16.msra.mxu0 %v85
  %105 = vmatprep.subr.bf16.mxu0 0
  %106 = vmatpush1.bf16.msra.mxu0 %v84
  %107 = vmatprep.subr.bf16.mxu0 0
  %108 = vmatpush1.bf16.msra.mxu0 %v83
  %109 = vmatprep.subr.bf16.mxu0 0
  %110 = vmatpush1.bf16.msra.mxu0 %v82
  %111 = vmatprep.subr.bf16.mxu0 0
  %112 = vmatpush1.bf16.msra.mxu0 %v81
  %113 = vmatprep.subr.bf16.mxu0 0
  %114 = vmatpush2.bf16.msra.mxu0 0
  %115 = vmatprep.subr.bf16.mxu0 0
  %116 = vmatpush2.bf16.msra.mxu0 0
  %117 = vmatprep.subr.bf16.mxu0 0
  %118 = vmatpush2.bf16.msra.mxu0 0
  %119 = vmatprep.subr.bf16.mxu0 0
  %120 = vmatpush2.bf16.msra.mxu0 0
  %121 = vmatprep.subr.bf16.mxu0 0
  %122 = vmatpush2.bf16.msra.mxu0 0
  %123 = vmatprep.subr.bf16.mxu0 0
  %124 = vmatpush2.bf16.msra.mxu0 0
  %125 = vmatprep.subr.bf16.mxu0 0
  %126 = vmatpush2.bf16.msra.mxu0 0
  %127 = vmatprep.subr.bf16.mxu0 0
  %128 = vmatpush2.bf16.msra.mxu0 0
  %129 = vmatprep.mubr.bf16.mxu0 0
  %130 = vmatmul.mubr.bf16.gmra.mxu0 %v25
  %v131 = vpop.f32.mrf.mxu0
  %v132 = vadd.f32 %v47, %v131
  %v133 = vpop.f32.mrf.mxu0
  %v134 = vpop.f32.mrf.mxu0
  %v135 = vpop.f32.mrf.mxu0
  %136 = vdwg.mxu0
  %137 = vst [vmem:[%s3] sm:$0xff] %v132
  %v138 = vld [vmem:[#allocation2] sm:$0xff]
  %139 = vmax.xlane.f32.xlu0 %v132
  %v140 = vpop.xlane.xlu0 %139
  %v141 = vmax.f32 %v138, %v140
  %v142 = vsub.f32 %v138, %v141
  %v143 = vmul.f32 %v142, 1.442695
  %v144 = vpow.pop %v143
  %v145 = vld [vmem:[#allocation3] sm:$0xff]
  %v146 = vmul.f32 %v144, %v145
  %148 = vset.pattern.permute.xlu0 0
  %149 = vperm.xlu0 %148, %v141
  %v150 = vpop.permute.xlu0 %149
  %v152 = vsub.f32 %v132, %v150
  %v153 = vmul.f32 %v152, 1.442695
  %v154 = vpow.pop %v153
  %155 = vadd.xlane.f32.xlu0 %v154
  %v156 = vpop.xlane.xlu0 %155
  %v157 = vadd.f32 %v146, %v156
  %vm158 = vcmask 7168
  %159 = vst.msk [vmem:[#allocation3] sm:$0xff] %vm158, %v157
  %160 = vst.msk [vmem:[#allocation2] sm:$0xff] %vm158, %v141
  // Predicated region
  $region18: #{suess_forward.4} parent=0 // pred_check
    %p161 = pneg %p17
  $region19: #{suess_forward.4} parent=0 // pred_check_branch
    %163 = sbr.rel (%p161) target = $region21
  $region20: #{suess_forward.4} parent=0 // pred_region
    %v164 = vld [vmem:[#allocation2] sm:$0xff]
    %v165 = vld [vmem:[#allocation3] sm:$0xff]
    %v166 = vlog2.pop %v165
    %v167 = vmul.f32 %v166, 0.6931472
    %v168 = vadd.f32 %v164, %v167
    %169 = vst.msk [vmem:[%s4] sm:$0xff] %vm158, %v168
  $region21: #{suess_forward.4} parent=0 // pred_fallthru
    _
  // Predicated region
  $region22: #{suess_forward.4} parent=0 // pred_check
    _
  $region23: #{suess_forward.4} parent=0 // pred_check_branch
    %171 = sbr.rel (0) target = $region25
  $region24: #{suess_forward.4} parent=0 // pred_region
    _
  $region25: #{suess_forward.4} parent=0 // pred_fallthru
    _
  // Predicated region
  $region26: #{suess_forward.4} parent=0 // pred_check
    _
  $region27: #{suess_forward.4} parent=0 // pred_check_branch
    %173 = sbr.rel (0) target = $region29
  $region28: #{suess_forward.4} parent=0 // pred_region
    _
  $region29: #{suess_forward.4} parent=0 // pred_fallthru
    _
  // Predicated region
  $region30: #{suess_forward.4} parent=0 // pred_check
    _
  $region31: #{suess_forward.4} parent=0 // pred_check_branch
    %175 = sbr.rel (0) target = $region33
  $region32: #{suess_forward.4} parent=0 // pred_region
    _
  $region33: #{suess_forward.4} parent=0 // pred_fallthru
    _
  // Predicated region
  $region34: #{suess_forward.4} parent=0 // pred_check
    _
  $region35: #{suess_forward.4} parent=0 // pred_check_branch
    %177 = sbr.rel (0) target = $region37
  $region36: #{suess_forward.4} parent=0 // pred_region
    _
  $region37: #{suess_forward.4} parent=0 // pred_fallthru
    _

// kernel: suess_forward.3
$region0: #{suess_forward.3}
  #allocation0 [shape = 'u32[]', space=smem, size = 0x4, offset = 0x4, fixed_abs, tag = 'smem constant byte address 0x4 - core index']
  #allocation1 [shape = 'u32[144,128]{1,0:T(1,128)}', space=vmem, size = 0x12000, scoped, tag = 'internal scratch']
  #allocation2 [shape = 'f32[8,512]{1,0:T(8,128)}', space=vmem, size = 0x4000, scoped, tag = 'scratch operand']
  %s0 = inlined_call_operand.vmem [shape: bf16[8,128], index: 0, kind: input, shape index: {}]
  %s1 = inlined_call_operand.hbm [shape: bf16[128,512], index: 1, kind: input, shape index: {}]
  %s2 = inlined_call_operand.hbm [shape: bf16[128,512], index: 2, kind: input, shape index: {}]
  %s3 = inlined_call_operand.vmem [shape: f32[1,512], index: 3, kind: input, shape index: {}]
  %s4 = inlined_call_operand.vmem [shape: f32[8,128], index: 4, kind: output, shape index: {}]
  %s5 = sld [smem:[#allocation0]]
  $region34: #{suess_forward.3} parent=0
    _
  %s7 = ssub.s32 1, %s5
  %s8 = scalar_select 0, %s7, %s5
  $region1: #{suess_forward.3} parent=0
    #allocation3 [shape = 'u8[131072]{0}', space=vmem, size = 0x20000, scoped, tag = 'input window, operand 1, single buffered']
    #allocation4 [shape = 's32[1]{0}', space=sflag, size = 0x4, scoped, tag = 'scoped memory for suess_forward.3']
    #allocation5 [shape = 'u8[131072]{0}', space=vmem, size = 0x20000, scoped, tag = 'input window, operand 2, single buffered']
    #allocation6 [shape = 's32[1]{0}', space=sflag, size = 0x4, scoped, tag = 'scoped memory for suess_forward.3']
    %9 = vsyncpa [#allocation4], 0
    %10 = vsyncpa [#allocation6], 0
    // Predicated region
    $region2: #{suess_forward.3} parent=1 // pred_check
      _
    $region3: #{suess_forward.3} parent=1 // pred_check_branch
      %12 = sbr.rel (0) target = $region5
    $region4: #{suess_forward.3} parent=1 // pred_region
      _
    $region5: #{suess_forward.3} parent=1 // pred_fallthru
      _
    // Predicated region
    $region6: #{suess_forward.3} parent=1 // pred_check
      _
    $region7: #{suess_forward.3} parent=1 // pred_check_branch
      %14 = sbr.rel (0) target = $region9
    $region8: #{suess_forward.3} parent=1 // pred_region
      %s16 = ssub.s32 4096, 4096
      %17 = vsyncadd [#allocation4], %s16
      %s18 = sshll.u32 [#allocation3], 4
      %s19 = int_to_ptr.vmem [resolvable:$true] %s18
      %24 = dma.hbm_to_vmem [thread:$0]  %s1, 4096, %s19, [#allocation4], 256, 256, 16
    $region9: #{suess_forward.3} parent=1 // pred_fallthru
      _
    // Predicated region
    $region10: #{suess_forward.3} parent=1 // pred_check
      _
    $region11: #{suess_forward.3} parent=1 // pred_check_branch
      %26 = sbr.rel (0) target = $region13
    $region12: #{suess_forward.3} parent=1 // pred_region
      %s28 = ssub.s32 4096, 4096
      %29 = vsyncadd [#allocation6], %s28
      %s30 = sshll.u32 [#allocation5], 4
      %s31 = int_to_ptr.vmem [resolvable:$true] %s30
      %36 = dma.hbm_to_vmem [thread:$0]  %s2, 4096, %s31, [#allocation6], 256, 256, 16
    $region13: #{suess_forward.3} parent=1 // pred_fallthru
      _
    // Predicated region
    $region14: #{suess_forward.3} parent=1 // pred_check
      _
    $region15: #{suess_forward.3} parent=1 // pred_check_branch
      %38 = sbr.rel (0) target = $region17
    $region16: #{suess_forward.3} parent=1 // pred_region
      _
    $region17: #{suess_forward.3} parent=1 // pred_fallthru
      _
    // Predicated region
    $region18: #{suess_forward.3} parent=1 // pred_check
      _
    $region19: #{suess_forward.3} parent=1 // pred_check_branch
      %40 = sbr.rel (0) target = $region21
    $region20: #{suess_forward.3} parent=1 // pred_region
      %41 = dma.done [#allocation4], 4096
    $region21: #{suess_forward.3} parent=1 // pred_fallthru
      _
    // Predicated region
    $region22: #{suess_forward.3} parent=1 // pred_check
      _
    $region23: #{suess_forward.3} parent=1 // pred_check_branch
      %43 = sbr.rel (0) target = $region25
    $region24: #{suess_forward.3} parent=1 // pred_region
      %44 = dma.done [#allocation6], 4096
    $region25: #{suess_forward.3} parent=1 // pred_fallthru
      _
    %v46 = vld [vmem:[%s0] sm:$0xf]
    %v47 = vld [vmem:[#allocation3] sm:$0xff]
    %v48 = vld [vmem:[#allocation3 + $0x8] sm:$0xff]
    %v49 = vld [vmem:[#allocation3 + $0x10] sm:$0xff]
    %v50 = vld [vmem:[#allocation3 + $0x18] sm:$0xff]
    %v51 = vld [vmem:[#allocation3 + $0x20] sm:$0xff]
    %v52 = vld [vmem:[#allocation3 + $0x28] sm:$0xff]
    %v53 = vld [vmem:[#allocation3 + $0x30] sm:$0xff]
    %v54 = vld [vmem:[#allocation3 + $0x38] sm:$0xff]
    %v55 = vld [vmem:[#allocation3 + $0x40] sm:$0xff]
    %v56 = vld [vmem:[#allocation3 + $0x48] sm:$0xff]
    %v57 = vld [vmem:[#allocation3 + $0x50] sm:$0xff]
    %v58 = vld [vmem:[#allocation3 + $0x58] sm:$0xff]
    %v59 = vld [vmem:[#allocation3 + $0x60] sm:$0xff]
    %v60 = vld [vmem:[#allocation3 + $0x68] sm:$0xff]
    %v61 = vld [vmem:[#allocation3 + $0x70] sm:$0xff]
    %v62 = vld [vmem:[#allocation3 + $0x78] sm:$0xff]
    %v63 = vld [vmem:[#allocation3 + $0x80] sm:$0xff]
    %v64 = vld [vmem:[#allocation3 + $0x88] sm:$0xff]
    %v65 = vld [vmem:[#allocation3 + $0x90] sm:$0xff]
    %v66 = vld [vmem:[#allocation3 + $0x98] sm:$0xff]
    %v67 = vld [vmem:[#allocation3 + $0xa0] sm:$0xff]
    %v68 = vld [vmem:[#allocation3 + $0xa8] sm:$0xff]
    %v69 = vld [vmem:[#allocation3 + $0xb0] sm:$0xff]
    %v70 = vld [vmem:[#allocation3 + $0xb8] sm:$0xff]
    %v71 = vld [vmem:[#allocation3 + $0xc0] sm:$0xff]
    %v72 = vld [vmem:[#allocation3 + $0xc8] sm:$0xff]
    %v73 = vld [vmem:[#allocation3 + $0xd0] sm:$0xff]
    %v74 = vld [vmem:[#allocation3 + $0xd8] sm:$0xff]
    %v75 = vld [vmem:[#allocation3 + $0xe0] sm:$0xff]
    %v76 = vld [vmem:[#allocation3 + $0xe8] sm:$0xff]
    %v77 = vld [vmem:[#allocation3 + $0xf0] sm:$0xff]
    %v78 = vld [vmem:[#allocation3 + $0xf8] sm:$0xff]
    %v79 = vld [vmem:[%s3] sm:$0xf]
    %v81 = vlaneseq
    %v82 = vshrl.u32 %v81, 7
    %v83 = vsub.s32 0, %v82
    %v84 = vrot.slane %v79, %v83
    %v85 = vlaneseq
    %v86 = vshrl.u32 %v85, 7
    %v87 = vsub.s32 1, %v86
    %v88 = vrot.slane %v79, %v87
    %v89 = vlaneseq
    %v90 = vshrl.u32 %v89, 7
    %v91 = vsub.s32 2, %v90
    %v92 = vrot.slane %v79, %v91
    %v93 = vlaneseq
    %v94 = vshrl.u32 %v93, 7
    %v95 = vsub.s32 3, %v94
    %v96 = vrot.slane %v79, %v95
    %v133 = vunpack.c.l.b16 %v47
    %v134 = vunpack.c.h.b16 %v47
    %v135 = vunpack.c.l.b16 %v48
    %v136 = vunpack.c.h.b16 %v48
    %v137 = vunpack.c.l.b16 %v49
    %v138 = vunpack.c.h.b16 %v49
    %v139 = vunpack.c.l.b16 %v50
    %v140 = vunpack.c.h.b16 %v50
    %v141 = vunpack.c.l.b16 %v51
    %v142 = vunpack.c.h.b16 %v51
    %v143 = vunpack.c.l.b16 %v52
    %v144 = vunpack.c.h.b16 %v52
    %v145 = vunpack.c.l.b16 %v53
    %v146 = vunpack.c.h.b16 %v53
    %v147 = vunpack.c.l.b16 %v54
    %v148 = vunpack.c.h.b16 %v54
    %v149 = vunpack.c.l.b16 %v55
    %v150 = vunpack.c.h.b16 %v55
    %v151 = vunpack.c.l.b16 %v56
    %v152 = vunpack.c.h.b16 %v56
    %v153 = vunpack.c.l.b16 %v57
    %v154 = vunpack.c.h.b16 %v57
    %v155 = vunpack.c.l.b16 %v58
    %v156 = vunpack.c.h.b16 %v58
    %v157 = vunpack.c.l.b16 %v59
    %v158 = vunpack.c.h.b16 %v59
    %v159 = vunpack.c.l.b16 %v60
    %v160 = vunpack.c.h.b16 %v60
    %v161 = vunpack.c.l.b16 %v61
    %v162 = vunpack.c.h.b16 %v61
    %v163 = vunpack.c.l.b16 %v62
    %v164 = vunpack.c.h.b16 %v62
    %v165 = vunpack.c.l.b16 %v63
    %v166 = vunpack.c.h.b16 %v63
    %v167 = vunpack.c.l.b16 %v64
    %v168 = vunpack.c.h.b16 %v64
    %v169 = vunpack.c.l.b16 %v65
    %v170 = vunpack.c.h.b16 %v65
    %v171 = vunpack.c.l.b16 %v66
    %v172 = vunpack.c.h.b16 %v66
    %v173 = vunpack.c.l.b16 %v67
    %v174 = vunpack.c.h.b16 %v67
    %v175 = vunpack.c.l.b16 %v68
    %v176 = vunpack.c.h.b16 %v68
    %v177 = vunpack.c.l.b16 %v69
    %v178 = vunpack.c.h.b16 %v69
    %v179 = vunpack.c.l.b16 %v70
    %v180 = vunpack.c.h.b16 %v70
    %v181 = vunpack.c.l.b16 %v71
    %v182 = vunpack.c.h.b16 %v71
    %v183 = vunpack.c.l.b16 %v72
    %v184 = vunpack.c.h.b16 %v72
    %v185 = vunpack.c.l.b16 %v73
    %v186 = vunpack.c.h.b16 %v73
    %v187 = vunpack.c.l.b16 %v74
    %v188 = vunpack.c.h.b16 %v74
    %v189 = vunpack.c.l.b16 %v75
    %v190 = vunpack.c.h.b16 %v75
    %v191 = vunpack.c.l.b16 %v76
    %v192 = vunpack.c.h.b16 %v76
    %v193 = vunpack.c.l.b16 %v77
    %v194 = vunpack.c.h.b16 %v77
    %v195 = vunpack.c.l.b16 %v78
    %v196 = vunpack.c.h.b16 %v78
    %v197 = vpack.c.b16 %v137, %v133
    %v198 = vpack.c.b16 %v138, %v134
    %v199 = vpack.c.b16 %v139, %v135
    %v200 = vpack.c.b16 %v140, %v136
    %v201 = vpack.c.b16 %v145, %v141
    %v202 = vpack.c.b16 %v146, %v142
    %v203 = vpack.c.b16 %v147, %v143
    %v204 = vpack.c.b16 %v148, %v144
    %v205 = vpack.c.b16 %v153, %v149
    %v206 = vpack.c.b16 %v154, %v150
    %v207 = vpack.c.b16 %v155, %v151
    %v208 = vpack.c.b16 %v156, %v152
    %v209 = vpack.c.b16 %v161, %v157
    %v210 = vpack.c.b16 %v162, %v158
    %v211 = vpack.c.b16 %v163, %v159
    %v212 = vpack.c.b16 %v164, %v160
    %v213 = vpack.c.b16 %v169, %v165
    %v214 = vpack.c.b16 %v170, %v166
    %v215 = vpack.c.b16 %v171, %v167
    %v216 = vpack.c.b16 %v172, %v168
    %v217 = vpack.c.b16 %v177, %v173
    %v218 = vpack.c.b16 %v178, %v174
    %v219 = vpack.c.b16 %v179, %v175
    %v220 = vpack.c.b16 %v180, %v176
    %v221 = vpack.c.b16 %v185, %v181
    %v222 = vpack.c.b16 %v186, %v182
    %v223 = vpack.c.b16 %v187, %v183
    %v224 = vpack.c.b16 %v188, %v184
    %v225 = vpack.c.b16 %v193, %v189
    %v226 = vpack.c.b16 %v194, %v190
    %v227 = vpack.c.b16 %v195, %v191
    %v228 = vpack.c.b16 %v196, %v192
    %261 = vmatprep.subr.bf16.mxu0 %v226
    %262 = vmatpush1.bf16.msra.mxu0 %v225
    %263 = vmatprep.subr.bf16.mxu0 %v222
    %264 = vmatpush1.bf16.msra.mxu0 %v221
    %265 = vmatprep.subr.bf16.mxu0 %v218
    %266 = vmatpush1.bf16.msra.mxu0 %v217
    %267 = vmatprep.subr.bf16.mxu0 %v214
    %268 = vmatpush1.bf16.msra.mxu0 %v213
    %269 = vmatprep.subr.bf16.mxu0 %v210
    %270 = vmatpush1.bf16.msra.mxu0 %v209
    %271 = vmatprep.subr.bf16.mxu0 %v206
    %272 = vmatpush1.bf16.msra.mxu0 %v205
    %273 = vmatprep.subr.bf16.mxu0 %v202
    %274 = vmatpush1.bf16.msra.mxu0 %v201
    %275 = vmatprep.subr.bf16.mxu0 %v198
    %276 = vmatpush1.bf16.msra.mxu0 %v197
    %277 = vmatprep.subr.bf16.mxu0 0
    %278 = vmatpush2.bf16.msra.mxu0 0
    %279 = vmatprep.subr.bf16.mxu0 0
    %280 = vmatpush2.bf16.msra.mxu0 0
    %281 = vmatprep.subr.bf16.mxu0 0
    %282 = vmatpush2.bf16.msra.mxu0 0
    %283 = vmatprep.subr.bf16.mxu0 0
    %284 = vmatpush2.bf16.msra.mxu0 0
    %285 = vmatprep.subr.bf16.mxu0 0
    %286 = vmatpush2.bf16.msra.mxu0 0
    %287 = vmatprep.subr.bf16.mxu0 0
    %288 = vmatpush2.bf16.msra.mxu0 0
    %289 = vmatprep.subr.bf16.mxu0 0
    %290 = vmatpush2.bf16.msra.mxu0 0
    %291 = vmatprep.subr.bf16.mxu0 0
    %292 = vmatpush2.bf16.msra.mxu0 0
    %293 = vmatprep.mubr.bf16.mxu0 0
    %294 = vmatmul.mubr.bf16.gmra.mxu0 %v46
    %v295 = vpop.f32.mrf.mxu0
    %v296 = vadd.f32 %v84, %v295
    %v297 = vpop.f32.mrf.mxu0
    %v298 = vadd.f32 %v88, %v297
    %v299 = vpop.f32.mrf.mxu0
    %v300 = vpop.f32.mrf.mxu0
    %301 = vdwg.mxu0
    %302 = vmatprep.subr.bf16.mxu0 %v228
    %303 = vmatpush1.bf16.msra.mxu0 %v227
    %304 = vmatprep.subr.bf16.mxu0 %v224
    %305 = vmatpush1.bf16.msra.mxu0 %v223
    %306 = vmatprep.subr.bf16.mxu0 %v220
    %307 = vmatpush1.bf16.msra.mxu0 %v219
    %308 = vmatprep.subr.bf16.mxu0 %v216
    %309 = vmatpush1.bf16.msra.mxu0 %v215
    %310 = vmatprep.subr.bf16.mxu0 %v212
    %311 = vmatpush1.bf16.msra.mxu0 %v211
    %312 = vmatprep.subr.bf16.mxu0 %v208
    %313 = vmatpush1.bf16.msra.mxu0 %v207
    %314 = vmatprep.subr.bf16.mxu0 %v204
    %315 = vmatpush1.bf16.msra.mxu0 %v203
    %316 = vmatprep.subr.bf16.mxu0 %v200
    %317 = vmatpush1.bf16.msra.mxu0 %v199
    %318 = vmatprep.subr.bf16.mxu0 0
    %319 = vmatpush2.bf16.msra.mxu0 0
    %320 = vmatprep.subr.bf16.mxu0 0
    %321 = vmatpush2.bf16.msra.mxu0 0
    %322 = vmatprep.subr.bf16.mxu0 0
    %323 = vmatpush2.bf16.msra.mxu0 0
    %324 = vmatprep.subr.bf16.mxu0 0
    %325 = vmatpush2.bf16.msra.mxu0 0
    %326 = vmatprep.subr.bf16.mxu0 0
    %327 = vmatpush2.bf16.msra.mxu0 0
    %328 = vmatprep.subr.bf16.mxu0 0
    %329 = vmatpush2.bf16.msra.mxu0 0
    %330 = vmatprep.subr.bf16.mxu0 0
    %331 = vmatpush2.bf16.msra.mxu0 0
    %332 = vmatprep.subr.bf16.mxu0 0
    %333 = vmatpush2.bf16.msra.mxu0 0
    %334 = vmatprep.mubr.bf16.mxu0 0
    %335 = vmatmul.mubr.bf16.gmra.mxu0 %v46
    %v336 = vpop.f32.mrf.mxu0
    %v337 = vadd.f32 %v92, %v336
    %v338 = vpop.f32.mrf.mxu0
    %v339 = vadd.f32 %v96, %v338
    %v340 = vpop.f32.mrf.mxu0
    %v341 = vpop.f32.mrf.mxu0
    %342 = vdwg.mxu0
    %343 = vst [vmem:[#allocation2] sm:$0xff] %v296
    %344 = vst [vmem:[#allocation2 + $0x8] sm:$0xff] %v298
    %345 = vst [vmem:[#allocation2 + $0x10] sm:$0xff] %v337
    %346 = vst [vmem:[#allocation2 + $0x18] sm:$0xff] %v339
    %s347 = smul.u32 0, 4
    %s348 = smul.addr %s347, 8
    %s349 = scalar_lea.vmem [#allocation2], %s348
    %v350 = vld [vmem:[%s349] sm:$0xff]
    %v351 = vld [vmem:[%s349 + $0x8] sm:$0xff]
    %v352 = vld [vmem:[%s349 + $0x10] sm:$0xff]
    %v353 = vld [vmem:[%s349 + $0x18] sm:$0xff]
    %v354 = vld [vmem:[#allocation5] sm:$0xff]
    %v355 = vld [vmem:[#allocation5 + $0x8] sm:$0xff]
    %v356 = vld [vmem:[#allocation5 + $0x10] sm:$0xff]
    %v357 = vld [vmem:[#allocation5 + $0x18] sm:$0xff]
    %v358 = vld [vmem:[#allocation5 + $0x20] sm:$0xff]
    %v359 = vld [vmem:[#allocation5 + $0x28] sm:$0xff]
    %v360 = vld [vmem:[#allocation5 + $0x30] sm:$0xff]
    %v361 = vld [vmem:[#allocation5 + $0x38] sm:$0xff]
    %v362 = vld [vmem:[#allocation5 + $0x40] sm:$0xff]
    %v363 = vld [vmem:[#allocation5 + $0x48] sm:$0xff]
    %v364 = vld [vmem:[#allocation5 + $0x50] sm:$0xff]
    %v365 = vld [vmem:[#allocation5 + $0x58] sm:$0xff]
    %v366 = vld [vmem:[#allocation5 + $0x60] sm:$0xff]
    %v367 = vld [vmem:[#allocation5 + $0x68] sm:$0xff]
    %v368 = vld [vmem:[#allocation5 + $0x70] sm:$0xff]
    %v369 = vld [vmem:[#allocation5 + $0x78] sm:$0xff]
    %v370 = vld [vmem:[#allocation5 + $0x80] sm:$0xff]
    %v371 = vld [vmem:[#allocation5 + $0x88] sm:$0xff]
    %v372 = vld [vmem:[#allocation5 + $0x90] sm:$0xff]
    %v373 = vld [vmem:[#allocation5 + $0x98] sm:$0xff]
    %v374 = vld [vmem:[#allocation5 + $0xa0] sm:$0xff]
    %v375 = vld [vmem:[#allocation5 + $0xa8] sm:$0xff]
    %v376 = vld [vmem:[#allocation5 + $0xb0] sm:$0xff]
    %v377 = vld [vmem:[#allocation5 + $0xb8] sm:$0xff]
    %v378 = vld [vmem:[#allocation5 + $0xc0] sm:$0xff]
    %v379 = vld [vmem:[#allocation5 + $0xc8] sm:$0xff]
    %v380 = vld [vmem:[#allocation5 + $0xd0] sm:$0xff]
    %v381 = vld [vmem:[#allocation5 + $0xd8] sm:$0xff]
    %v382 = vld [vmem:[#allocation5 + $0xe0] sm:$0xff]
    %v383 = vld [vmem:[#allocation5 + $0xe8] sm:$0xff]
    %v384 = vld [vmem:[#allocation5 + $0xf0] sm:$0xff]
    %v385 = vld [vmem:[#allocation5 + $0xf8] sm:$0xff]
    %v418 = vunpack.c.l.b16 %v354
    %v419 = vunpack.c.h.b16 %v354
    %v420 = vunpack.c.l.b16 %v355
    %v421 = vunpack.c.h.b16 %v355
    %v422 = vunpack.c.l.b16 %v356
    %v423 = vunpack.c.h.b16 %v356
    %v424 = vunpack.c.l.b16 %v357
    %v425 = vunpack.c.h.b16 %v357
    %v426 = vunpack.c.l.b16 %v358
    %v427 = vunpack.c.h.b16 %v358
    %v428 = vunpack.c.l.b16 %v359
    %v429 = vunpack.c.h.b16 %v359
    %v430 = vunpack.c.l.b16 %v360
    %v431 = vunpack.c.h.b16 %v360
    %v432 = vunpack.c.l.b16 %v361
    %v433 = vunpack.c.h.b16 %v361
    %v434 = vunpack.c.l.b16 %v362
    %v435 = vunpack.c.h.b16 %v362
    %v436 = vunpack.c.l.b16 %v363
    %v437 = vunpack.c.h.b16 %v363
    %v438 = vunpack.c.l.b16 %v364
    %v439 = vunpack.c.h.b16 %v364
    %v440 = vunpack.c.l.b16 %v365
    %v441 = vunpack.c.h.b16 %v365
    %v442 = vunpack.c.l.b16 %v366
    %v443 = vunpack.c.h.b16 %v366
    %v444 = vunpack.c.l.b16 %v367
    %v445 = vunpack.c.h.b16 %v367
    %v446 = vunpack.c.l.b16 %v368
    %v447 = vunpack.c.h.b16 %v368
    %v448 = vunpack.c.l.b16 %v369
    %v449 = vunpack.c.h.b16 %v369
    %v450 = vunpack.c.l.b16 %v370
    %v451 = vunpack.c.h.b16 %v370
    %v452 = vunpack.c.l.b16 %v371
    %v453 = vunpack.c.h.b16 %v371
    %v454 = vunpack.c.l.b16 %v372
    %v455 = vunpack.c.h.b16 %v372
    %v456 = vunpack.c.l.b16 %v373
    %v457 = vunpack.c.h.b16 %v373
    %v458 = vunpack.c.l.b16 %v374
    %v459 = vunpack.c.h.b16 %v374
    %v460 = vunpack.c.l.b16 %v375
    %v461 = vunpack.c.h.b16 %v375
    %v462 = vunpack.c.l.b16 %v376
    %v463 = vunpack.c.h.b16 %v376
    %v464 = vunpack.c.l.b16 %v377
    %v465 = vunpack.c.h.b16 %v377
    %v466 = vunpack.c.l.b16 %v378
    %v467 = vunpack.c.h.b16 %v378
    %v468 = vunpack.c.l.b16 %v379
    %v469 = vunpack.c.h.b16 %v379
    %v470 = vunpack.c.l.b16 %v380
    %v471 = vunpack.c.h.b16 %v380
    %v472 = vunpack.c.l.b16 %v381
    %v473 = vunpack.c.h.b16 %v381
    %v474 = vunpack.c.l.b16 %v382
    %v475 = vunpack.c.h.b16 %v382
    %v476 = vunpack.c.l.b16 %v383
    %v477 = vunpack.c.h.b16 %v383
    %v478 = vunpack.c.l.b16 %v384
    %v479 = vunpack.c.h.b16 %v384
    %v480 = vunpack.c.l.b16 %v385
    %v481 = vunpack.c.h.b16 %v385
    %v482 = vpack.c.b16 %v422, %v418
    %v483 = vpack.c.b16 %v423, %v419
    %v484 = vpack.c.b16 %v424, %v420
    %v485 = vpack.c.b16 %v425, %v421
    %v486 = vpack.c.b16 %v430, %v426
    %v487 = vpack.c.b16 %v431, %v427
    %v488 = vpack.c.b16 %v432, %v428
    %v489 = vpack.c.b16 %v433, %v429
    %v490 = vpack.c.b16 %v438, %v434
    %v491 = vpack.c.b16 %v439, %v435
    %v492 = vpack.c.b16 %v440, %v436
    %v493 = vpack.c.b16 %v441, %v437
    %v494 = vpack.c.b16 %v446, %v442
    %v495 = vpack.c.b16 %v447, %v443
    %v496 = vpack.c.b16 %v448, %v444
    %v497 = vpack.c.b16 %v449, %v445
    %v498 = vpack.c.b16 %v454, %v450
    %v499 = vpack.c.b16 %v455, %v451
    %v500 = vpack.c.b16 %v456, %v452
    %v501 = vpack.c.b16 %v457, %v453
    %v502 = vpack.c.b16 %v462, %v458
    %v503 = vpack.c.b16 %v463, %v459
    %v504 = vpack.c.b16 %v464, %v460
    %v505 = vpack.c.b16 %v465, %v461
    %v506 = vpack.c.b16 %v470, %v466
    %v507 = vpack.c.b16 %v471, %v467
    %v508 = vpack.c.b16 %v472, %v468
    %v509 = vpack.c.b16 %v473, %v469
    %v510 = vpack.c.b16 %v478, %v474
    %v511 = vpack.c.b16 %v479, %v475
    %v512 = vpack.c.b16 %v480, %v476
    %v513 = vpack.c.b16 %v481, %v477
    %546 = vmatprep.subr.bf16.mxu0 %v511
    %547 = vmatpush1.bf16.msra.mxu0 %v510
    %548 = vmatprep.subr.bf16.mxu0 %v507
    %549 = vmatpush1.bf16.msra.mxu0 %v506
    %550 = vmatprep.subr.bf16.mxu0 %v503
    %551 = vmatpush1.bf16.msra.mxu0 %v502
    %552 = vmatprep.subr.bf16.mxu0 %v499
    %553 = vmatpush1.bf16.msra.mxu0 %v498
    %554 = vmatprep.subr.bf16.mxu0 %v495
    %555 = vmatpush1.bf16.msra.mxu0 %v494
    %556 = vmatprep.subr.bf16.mxu0 %v491
    %557 = vmatpush1.bf16.msra.mxu0 %v490
    %558 = vmatprep.subr.bf16.mxu0 %v487
    %559 = vmatpush1.bf16.msra.mxu0 %v486
    %560 = vmatprep.subr.bf16.mxu0 %v483
    %561 = vmatpush1.bf16.msra.mxu0 %v482
    %562 = vmatprep.subr.bf16.mxu0 0
    %563 = vmatpush2.bf16.msra.mxu0 0
    %564 = vmatprep.subr.bf16.mxu0 0
    %565 = vmatpush2.bf16.msra.mxu0 0
    %566 = vmatprep.subr.bf16.mxu0 0
    %567 = vmatpush2.bf16.msra.mxu0 0
    %568 = vmatprep.subr.bf16.mxu0 0
    %569 = vmatpush2.bf16.msra.mxu0 0
    %570 = vmatprep.subr.bf16.mxu0 0
    %571 = vmatpush2.bf16.msra.mxu0 0
    %572 = vmatprep.subr.bf16.mxu0 0
    %573 = vmatpush2.bf16.msra.mxu0 0
    %574 = vmatprep.subr.bf16.mxu0 0
    %575 = vmatpush2.bf16.msra.mxu0 0
    %576 = vmatprep.subr.bf16.mxu0 0
    %577 = vmatpush2.bf16.msra.mxu0 0
    %578 = vmatprep.mubr.bf16.mxu0 0
    %579 = vmatmul.mubr.bf16.gmra.mxu0 0
    %v580 = vpop.f32.mrf.mxu0
    %v581 = vadd.f32 0.0, %v580
    %v582 = vpop.f32.mrf.mxu0
    %v583 = vadd.f32 0.0, %v582
    %v584 = vpop.f32.mrf.mxu0
    %v585 = vpop.f32.mrf.mxu0
    %586 = vdwg.mxu0
    %587 = vmatprep.subr.bf16.mxu0 %v513
    %588 = vmatpush1.bf16.msra.mxu0 %v512
    %589 = vmatprep.subr.bf16.mxu0 %v509
    %590 = vmatpush1.bf16.msra.mxu0 %v508
    %591 = vmatprep.subr.bf16.mxu0 %v505
    %592 = vmatpush1.bf16.msra.mxu0 %v504
    %593 = vmatprep.subr.bf16.mxu0 %v501
    %594 = vmatpush1.bf16.msra.mxu0 %v500
    %595 = vmatprep.subr.bf16.mxu0 %v497
    %596 = vmatpush1.bf16.msra.mxu0 %v496
    %597 = vmatprep.subr.bf16.mxu0 %v493
    %598 = vmatpush1.bf16.msra.mxu0 %v492
    %599 = vmatprep.subr.bf16.mxu0 %v489
    %600 = vmatpush1.bf16.msra.mxu0 %v488
    %601 = vmatprep.subr.bf16.mxu0 %v485
    %602 = vmatpush1.bf16.msra.mxu0 %v484
    %603 = vmatprep.subr.bf16.mxu0 0
    %604 = vmatpush2.bf16.msra.mxu0 0
    %605 = vmatprep.subr.bf16.mxu0 0
    %606 = vmatpush2.bf16.msra.mxu0 0
    %607 = vmatprep.subr.bf16.mxu0 0
    %608 = vmatpush2.bf16.msra.mxu0 0
    %609 = vmatprep.subr.bf16.mxu0 0
    %610 = vmatpush2.bf16.msra.mxu0 0
    %611 = vmatprep.subr.bf16.mxu0 0
    %612 = vmatpush2.bf16.msra.mxu0 0
    %613 = vmatprep.subr.bf16.mxu0 0
    %614 = vmatpush2.bf16.msra.mxu0 0
    %615 = vmatprep.subr.bf16.mxu0 0
    %616 = vmatpush2.bf16.msra.mxu0 0
    %617 = vmatprep.subr.bf16.mxu0 0
    %618 = vmatpush2.bf16.msra.mxu0 0
    %619 = vmatprep.mubr.bf16.mxu0 0
    %620 = vmatmul.mubr.bf16.gmra.mxu0 0
    %v621 = vpop.f32.mrf.mxu0
    %v622 = vadd.f32 0.0, %v621
    %v623 = vpop.f32.mrf.mxu0
    %v624 = vadd.f32 0.0, %v623
    %v625 = vpop.f32.mrf.mxu0
    %v626 = vpop.f32.mrf.mxu0
    %627 = vdwg.mxu0
    %v628 = vadd.f32 %v350, %v581
    %v629 = vadd.f32 %v351, %v583
    %v630 = vadd.f32 %v352, %v622
    %v631 = vadd.f32 %v353, %v624
    %v632 = vxor.u32 %v628, 2147483648
    %v633 = vmul.f32 %v632, 1.442695
    %v634 = vpow.pop %v633
    %v635 = vadd.f32 %v634, 1.0
    %v636 = vrcp.pop %v635
    %v637 = vmul.f32 1.0, %v636
    %v638 = vxor.u32 %v629, 2147483648
    %v639 = vmul.f32 %v638, 1.442695
    %v640 = vpow.pop %v639
    %v641 = vadd.f32 %v640, 1.0
    %v642 = vrcp.pop %v641
    %v643 = vmul.f32 1.0, %v642
    %v644 = vtanh.pop %v630
    %v645 = vxor.u32 %v631, 2147483648
    %v646 = vmul.f32 %v645, 1.442695
    %v647 = vpow.pop %v646
    %v648 = vadd.f32 %v647, 1.0
    %v649 = vrcp.pop %v648
    %v650 = vmul.f32 1.0, %v649
    %v651 = vmul.f32 %v643, 0.0
    %v652 = vmul.f32 %v637, %v644
    %v653 = vadd.f32 %v651, %v652
    %v654 = vtanh.pop %v653
    %v655 = vmul.f32 %v650, %v654
    %v656 = vpack.c.bf16 %v655, %v655
    %657 = vmatprep.subr.bf16.mxu0 %v511
    %658 = vmatpush1.bf16.msra.mxu0 %v510
    %659 = vmatprep.subr.bf16.mxu0 %v507
    %660 = vmatpush1.bf16.msra.mxu0 %v506
    %661 = vmatprep.subr.bf16.mxu0 %v503
    %662 = vmatpush1.bf16.msra.mxu0 %v502
    %663 = vmatprep.subr.bf16.mxu0 %v499
    %664 = vmatpush1.bf16.msra.mxu0 %v498
    %665 = vmatprep.subr.bf16.mxu0 %v495
    %666 = vmatpush1.bf16.msra.mxu0 %v494
    %667 = vmatprep.subr.bf16.mxu0 %v491
    %668 = vmatpush1.bf16.msra.mxu0 %v490
    %669 = vmatprep.subr.bf16.mxu0 %v487
    %670 = vmatpush1.bf16.msra.mxu0 %v486
    %671 = vmatprep.subr.bf16.mxu0 %v483
    %672 = vmatpush1.bf16.msra.mxu0 %v482
    %673 = vmatprep.subr.bf16.mxu0 0
    %674 = vmatpush2.bf16.msra.mxu0 0
    %675 = vmatprep.subr.bf16.mxu0 0
    %676 = vmatpush2.bf16.msra.mxu0 0
    %677 = vmatprep.subr.bf16.mxu0 0
    %678 = vmatpush2.bf16.msra.mxu0 0
    %679 = vmatprep.subr.bf16.mxu0 0
    %680 = vmatpush2.bf16.msra.mxu0 0
    %681 = vmatprep.subr.bf16.mxu0 0
    %682 = vmatpush2.bf16.msra.mxu0 0
    %683 = vmatprep.subr.bf16.mxu0 0
    %684 = vmatpush2.bf16.msra.mxu0 0
    %685 = vmatprep.subr.bf16.mxu0 0
    %686 = vmatpush2.bf16.msra.mxu0 0
    %687 = vmatprep.subr.bf16.mxu0 0
    %688 = vmatpush2.bf16.msra.mxu0 0
    %689 = vmatprep.mubr.bf16.mxu0 0
    %690 = vmatmul.mubr.bf16.gmra.mxu0 %v656
    %v691 = vpop.f32.mrf.mxu0
    %v692 = vadd.f32 0.0, %v691
    %v693 = vpop.f32.mrf.mxu0
    %v694 = vadd.f32 0.0, %v693
    %v695 = vpop.f32.mrf.mxu0
    %v696 = vpop.f32.mrf.mxu0
    %697 = vdwg.mxu0
    %698 = vmatprep.subr.bf16.mxu0 %v513
    %699 = vmatpush1.bf16.msra.mxu0 %v512
    %700 = vmatprep.subr.bf16.mxu0 %v509
    %701 = vmatpush1.bf16.msra.mxu0 %v508
    %702 = vmatprep.subr.bf16.mxu0 %v505
    %703 = vmatpush1.bf16.msra.mxu0 %v504
    %704 = vmatprep.subr.bf16.mxu0 %v501
    %705 = vmatpush1.bf16.msra.mxu0 %v500
    %706 = vmatprep.subr.bf16.mxu0 %v497
    %707 = vmatpush1.bf16.msra.mxu0 %v496
    %708 = vmatprep.subr.bf16.mxu0 %v493
    %709 = vmatpush1.bf16.msra.mxu0 %v492
    %710 = vmatprep.subr.bf16.mxu0 %v489
    %711 = vmatpush1.bf16.msra.mxu0 %v488
    %712 = vmatprep.subr.bf16.mxu0 %v485
    %713 = vmatpush1.bf16.msra.mxu0 %v484
    %714 = vmatprep.subr.bf16.mxu0 0
    %715 = vmatpush2.bf16.msra.mxu0 0
    %716 = vmatprep.subr.bf16.mxu0 0
    %717 = vmatpush2.bf16.msra.mxu0 0
    %718 = vmatprep.subr.bf16.mxu0 0
    %719 = vmatpush2.bf16.msra.mxu0 0
    %720 = vmatprep.subr.bf16.mxu0 0
    %721 = vmatpush2.bf16.msra.mxu0 0
    %722 = vmatprep.subr.bf16.mxu0 0
    %723 = vmatpush2.bf16.msra.mxu0 0
    %724 = vmatprep.subr.bf16.mxu0 0
    %725 = vmatpush2.bf16.msra.mxu0 0
    %726 = vmatprep.subr.bf16.mxu0 0
    %727 = vmatpush2.bf16.msra.mxu0 0
    %728 = vmatprep.subr.bf16.mxu0 0
    %729 = vmatpush2.bf16.msra.mxu0 0
    %730 = vmatprep.mubr.bf16.mxu0 0
    %731 = vmatmul.mubr.bf16.gmra.mxu0 %v656
    %v732 = vpop.f32.mrf.mxu0
    %v733 = vadd.f32 0.0, %v732
    %v734 = vpop.f32.mrf.mxu0
    %v735 = vadd.f32 0.0, %v734
    %v736 = vpop.f32.mrf.mxu0
    %v737 = vpop.f32.mrf.mxu0
    %738 = vdwg.mxu0
    %v743 = vrot.slane %v692, 7
    %v744 = vrot.slane %v694, 7
    %v745 = vrot.slane %v733, 7
    %v746 = vrot.slane %v735, 7
    %v751 = vadd.f32 %v350, %v743
    %v752 = vadd.f32 %v351, %v744
    %v753 = vadd.f32 %v352, %v745
    %v754 = vadd.f32 %v353, %v746
    %v755 = vxor.u32 %v751, 2147483648
    %v756 = vmul.f32 %v755, 1.442695
    %v757 = vpow.pop %v756
    %v758 = vadd.f32 %v757, 1.0
    %v759 = vrcp.pop %v758
    %v760 = vmul.f32 1.0, %v759
    %v761 = vxor.u32 %v752, 2147483648
    %v762 = vmul.f32 %v761, 1.442695
    %v763 = vpow.pop %v762
    %v764 = vadd.f32 %v763, 1.0
    %v765 = vrcp.pop %v764
    %v766 = vmul.f32 1.0, %v765
    %v767 = vtanh.pop %v753
    %v768 = vxor.u32 %v754, 2147483648
    %v769 = vmul.f32 %v768, 1.442695
    %v770 = vpow.pop %v769
    %v771 = vadd.f32 %v770, 1.0
    %v772 = vrcp.pop %v771
    %v773 = vmul.f32 1.0, %v772
    %v775 = vrot.slane %v653, 7
    %v777 = vmul.f32 %v766, %v775
    %v778 = vmul.f32 %v760, %v767
    %v779 = vadd.f32 %v777, %v778
    %v780 = vtanh.pop %v779
    %v781 = vmul.f32 %v773, %v780
    %v782 = vpack.c.bf16 %v781, %v781
    %v784 = vshrl.u32 %v782, 16
    %787 = vmatprep.subr.bf16.mxu0 %v511
    %788 = vmatpush1.bf16.msra.mxu0 %v510
    %789 = vmatprep.subr.bf16.mxu0 %v507
    %790 = vmatpush1.bf16.msra.mxu0 %v506
    %791 = vmatprep.subr.bf16.mxu0 %v503
    %792 = vmatpush1.bf16.msra.mxu0 %v502
    %793 = vmatprep.subr.bf16.mxu0 %v499
    %794 = vmatpush1.bf16.msra.mxu0 %v498
    %795 = vmatprep.subr.bf16.mxu0 %v495
    %796 = vmatpush1.bf16.msra.mxu0 %v494
    %797 = vmatprep.subr.bf16.mxu0 %v491
    %798 = vmatpush1.bf16.msra.mxu0 %v490
    %799 = vmatprep.subr.bf16.mxu0 %v487
    %800 = vmatpush1.bf16.msra.mxu0 %v486
    %801 = vmatprep.subr.bf16.mxu0 %v483
    %802 = vmatpush1.bf16.msra.mxu0 %v482
    %803 = vmatprep.subr.bf16.mxu0 0
    %804 = vmatpush2.bf16.msra.mxu0 0
    %805 = vmatprep.subr.bf16.mxu0 0
    %806 = vmatpush2.bf16.msra.mxu0 0
    %807 = vmatprep.subr.bf16.mxu0 0
    %808 = vmatpush2.bf16.msra.mxu0 0
    %809 = vmatprep.subr.bf16.mxu0 0
    %810 = vmatpush2.bf16.msra.mxu0 0
    %811 = vmatprep.subr.bf16.mxu0 0
    %812 = vmatpush2.bf16.msra.mxu0 0
    %813 = vmatprep.subr.bf16.mxu0 0
    %814 = vmatpush2.bf16.msra.mxu0 0
    %815 = vmatprep.subr.bf16.mxu0 0
    %816 = vmatpush2.bf16.msra.mxu0 0
    %817 = vmatprep.subr.bf16.mxu0 0
    %818 = vmatpush2.bf16.msra.mxu0 0
    %819 = vmatprep.mubr.bf16.mxu0 0
    %820 = vmatmul.mubr.bf16.gmra.mxu0 %v784
    %v821 = vpop.f32.mrf.mxu0
    %v822 = vadd.f32 0.0, %v821
    %v823 = vpop.f32.mrf.mxu0
    %v824 = vadd.f32 0.0, %v823
    %v825 = vpop.f32.mrf.mxu0
    %v826 = vpop.f32.mrf.mxu0
    %827 = vdwg.mxu0
    %828 = vmatprep.subr.bf16.mxu0 %v513
    %829 = vmatpush1.bf16.msra.mxu0 %v512
    %830 = vmatprep.subr.bf16.mxu0 %v509
    %831 = vmatpush1.bf16.msra.mxu0 %v508
    %832 = vmatprep.subr.bf16.mxu0 %v505
    %833 = vmatpush1.bf16.msra.mxu0 %v504
    %834 = vmatprep.subr.bf16.mxu0 %v501
    %835 = vmatpush1.bf16.msra.mxu0 %v500
    %836 = vmatprep.subr.bf16.mxu0 %v497
    %837 = vmatpush1.bf16.msra.mxu0 %v496
    %838 = vmatprep.subr.bf16.mxu0 %v493
    %839 = vmatpush1.bf16.msra.mxu0 %v492
    %840 = vmatprep.subr.bf16.mxu0 %v489
    %841 = vmatpush1.bf16.msra.mxu0 %v488
    %842 = vmatprep.subr.bf16.mxu0 %v485
    %843 = vmatpush1.bf16.msra.mxu0 %v484
    %844 = vmatprep.subr.bf16.mxu0 0
    %845 = vmatpush2.bf16.msra.mxu0 0
    %846 = vmatprep.subr.bf16.mxu0 0
    %847 = vmatpush2.bf16.msra.mxu0 0
    %848 = vmatprep.subr.bf16.mxu0 0
    %849 = vmatpush2.bf16.msra.mxu0 0
    %850 = vmatprep.subr.bf16.mxu0 0
    %851 = vmatpush2.bf16.msra.mxu0 0
    %852 = vmatprep.subr.bf16.mxu0 0
    %853 = vmatpush2.bf16.msra.mxu0 0
    %854 = vmatprep.subr.bf16.mxu0 0
    %855 = vmatpush2.bf16.msra.mxu0 0
    %856 = vmatprep.subr.bf16.mxu0 0
    %857 = vmatpush2.bf16.msra.mxu0 0
    %858 = vmatprep.subr.bf16.mxu0 0
    %859 = vmatpush2.bf16.msra.mxu0 0
    %860 = vmatprep.mubr.bf16.mxu0 0
    %861 = vmatmul.mubr.bf16.gmra.mxu0 %v784
    %v862 = vpop.f32.mrf.mxu0
    %v863 = vadd.f32 0.0, %v862
    %v864 = vpop.f32.mrf.mxu0
    %v865 = vadd.f32 0.0, %v864
    %v866 = vpop.f32.mrf.mxu0
    %v867 = vpop.f32.mrf.mxu0
    %868 = vdwg.mxu0
    %v873 = vrot.slane %v822, 6
    %v874 = vrot.slane %v824, 6
    %v875 = vrot.slane %v863, 6
    %v876 = vrot.slane %v865, 6
    %v881 = vadd.f32 %v350, %v873
    %v882 = vadd.f32 %v351, %v874
    %v883 = vadd.f32 %v352, %v875
    %v884 = vadd.f32 %v353, %v876
    %v885 = vxor.u32 %v881, 2147483648
    %v886 = vmul.f32 %v885, 1.442695
    %v887 = vpow.pop %v886
    %v888 = vadd.f32 %v887, 1.0
    %v889 = vrcp.pop %v888
    %v890 = vmul.f32 1.0, %v889
    %v891 = vxor.u32 %v882, 2147483648
    %v892 = vmul.f32 %v891, 1.442695
    %v893 = vpow.pop %v892
    %v894 = vadd.f32 %v893, 1.0
    %v895 = vrcp.pop %v894
    %v896 = vmul.f32 1.0, %v895
    %v897 = vtanh.pop %v883
    %v898 = vxor.u32 %v884, 2147483648
    %v899 = vmul.f32 %v898, 1.442695
    %v900 = vpow.pop %v899
    %v901 = vadd.f32 %v900, 1.0
    %v902 = vrcp.pop %v901
    %v903 = vmul.f32 1.0, %v902
    %v905 = vrot.slane %v779, 7
    %v907 = vmul.f32 %v896, %v905
    %v908 = vmul.f32 %v890, %v897
    %v909 = vadd.f32 %v907, %v908
    %v910 = vtanh.pop %v909
    %v911 = vmul.f32 %v903, %v910
    %v912 = vpack.c.bf16 %v911, %v911
    %v914 = vrot.slane %v912, 1
    %916 = vmatprep.subr.bf16.mxu0 %v511
    %917 = vmatpush1.bf16.msra.mxu0 %v510
    %918 = vmatprep.subr.bf16.mxu0 %v507
    %919 = vmatpush1.bf16.msra.mxu0 %v506
    %920 = vmatprep.subr.bf16.mxu0 %v503
    %921 = vmatpush1.bf16.msra.mxu0 %v502
    %922 = vmatprep.subr.bf16.mxu0 %v499
    %923 = vmatpush1.bf16.msra.mxu0 %v498
    %924 = vmatprep.subr.bf16.mxu0 %v495
    %925 = vmatpush1.bf16.msra.mxu0 %v494
    %926 = vmatprep.subr.bf16.mxu0 %v491
    %927 = vmatpush1.bf16.msra.mxu0 %v490
    %928 = vmatprep.subr.bf16.mxu0 %v487
    %929 = vmatpush1.bf16.msra.mxu0 %v486
    %930 = vmatprep.subr.bf16.mxu0 %v483
    %931 = vmatpush1.bf16.msra.mxu0 %v482
    %932 = vmatprep.subr.bf16.mxu0 0
    %933 = vmatpush2.bf16.msra.mxu0 0
    %934 = vmatprep.subr.bf16.mxu0 0
    %935 = vmatpush2.bf16.msra.mxu0 0
    %936 = vmatprep.subr.bf16.mxu0 0
    %937 = vmatpush2.bf16.msra.mxu0 0
    %938 = vmatprep.subr.bf16.mxu0 0
    %939 = vmatpush2.bf16.msra.mxu0 0
    %940 = vmatprep.subr.bf16.mxu0 0
    %941 = vmatpush2.bf16.msra.mxu0 0
    %942 = vmatprep.subr.bf16.mxu0 0
    %943 = vmatpush2.bf16.msra.mxu0 0
    %944 = vmatprep.subr.bf16.mxu0 0
    %945 = vmatpush2.bf16.msra.mxu0 0
    %946 = vmatprep.subr.bf16.mxu0 0
    %947 = vmatpush2.bf16.msra.mxu0 0
    %948 = vmatprep.mubr.bf16.mxu0 0
    %949 = vmatmul.mubr.bf16.gmra.mxu0 %v914
    %v950 = vpop.f32.mrf.mxu0
    %v951 = vadd.f32 0.0, %v950
    %v952 = vpop.f32.mrf.mxu0
    %v953 = vadd.f32 0.0, %v952
    %v954 = vpop.f32.mrf.mxu0
    %v955 = vpop.f32.mrf.mxu0
    %956 = vdwg.mxu0
    %957 = vmatprep.subr.bf16.mxu0 %v513
    %958 = vmatpush1.bf16.msra.mxu0 %v512
    %959 = vmatprep.subr.bf16.mxu0 %v509
    %960 = vmatpush1.bf16.msra.mxu0 %v508
    %961 = vmatprep.subr.bf16.mxu0 %v505
    %962 = vmatpush1.bf16.msra.mxu0 %v504
    %963 = vmatprep.subr.bf16.mxu0 %v501
    %964 = vmatpush1.bf16.msra.mxu0 %v500
    %965 = vmatprep.subr.bf16.mxu0 %v497
    %966 = vmatpush1.bf16.msra.mxu0 %v496
    %967 = vmatprep.subr.bf16.mxu0 %v493
    %968 = vmatpush1.bf16.msra.mxu0 %v492
    %969 = vmatprep.subr.bf16.mxu0 %v489
    %970 = vmatpush1.bf16.msra.mxu0 %v488
    %971 = vmatprep.subr.bf16.mxu0 %v485
    %972 = vmatpush1.bf16.msra.mxu0 %v484
    %973 = vmatprep.subr.bf16.mxu0 0
    %974 = vmatpush2.bf16.msra.mxu0 0
    %975 = vmatprep.subr.bf16.mxu0 0
    %976 = vmatpush2.bf16.msra.mxu0 0
    %977 = vmatprep.subr.bf16.mxu0 0
    %978 = vmatpush2.bf16.msra.mxu0 0
    %979 = vmatprep.subr.bf16.mxu0 0
    %980 = vmatpush2.bf16.msra.mxu0 0
    %981 = vmatprep.subr.bf16.mxu0 0
    %982 = vmatpush2.bf16.msra.mxu0 0
    %983 = vmatprep.subr.bf16.mxu0 0
    %984 = vmatpush2.bf16.msra.mxu0 0
    %985 = vmatprep.subr.bf16.mxu0 0
    %986 = vmatpush2.bf16.msra.mxu0 0
    %987 = vmatprep.subr.bf16.mxu0 0
    %988 = vmatpush2.bf16.msra.mxu0 0
    %989 = vmatprep.mubr.bf16.mxu0 0
    %990 = vmatmul.mubr.bf16.gmra.mxu0 %v914
    %v991 = vpop.f32.mrf.mxu0
    %v992 = vadd.f32 0.0, %v991
    %v993 = vpop.f32.mrf.mxu0
    %v994 = vadd.f32 0.0, %v993
    %v995 = vpop.f32.mrf.mxu0
    %v996 = vpop.f32.mrf.mxu0
    %997 = vdwg.mxu0
    %v1002 = vrot.slane %v951, 5
    %v1003 = vrot.slane %v953, 5
    %v1004 = vrot.slane %v992, 5
    %v1005 = vrot.slane %v994, 5
    %v1010 = vadd.f32 %v350, %v1002
    %v1011 = vadd.f32 %v351, %v1003
    %v1012 = vadd.f32 %v352, %v1004
    %v1013 = vadd.f32 %v353, %v1005
    %v1014 = vxor.u32 %v1010, 2147483648
    %v1015 = vmul.f32 %v1014, 1.442695
    %v1016 = vpow.pop %v1015
    %v1017 = vadd.f32 %v1016, 1.0
    %v1018 = vrcp.pop %v1017
    %v1019 = vmul.f32 1.0, %v1018
    %v1020 = vxor.u32 %v1011, 2147483648
    %v1021 = vmul.f32 %v1020, 1.442695
    %v1022 = vpow.pop %v1021
    %v1023 = vadd.f32 %v1022, 1.0
    %v1024 = vrcp.pop %v1023
    %v1025 = vmul.f32 1.0, %v1024
    %v1026 = vtanh.pop %v1012
    %v1027 = vxor.u32 %v1013, 2147483648
    %v1028 = vmul.f32 %v1027, 1.442695
    %v1029 = vpow.pop %v1028
    %v1030 = vadd.f32 %v1029, 1.0
    %v1031 = vrcp.pop %v1030
    %v1032 = vmul.f32 1.0, %v1031
    %v1034 = vrot.slane %v909, 7
    %v1036 = vmul.f32 %v1025, %v1034
    %v1037 = vmul.f32 %v1019, %v1026
    %v1038 = vadd.f32 %v1036, %v1037
    %v1039 = vtanh.pop %v1038
    %v1040 = vmul.f32 %v1032, %v1039
    %v1041 = vpack.c.bf16 %v1040, %v1040
    %v1043 = vshrl.u32 %v1041, 16
    %v1045 = vrot.slane %v1043, 1
    %1047 = vmatprep.subr.bf16.mxu0 %v511
    %1048 = vmatpush1.bf16.msra.mxu0 %v510
    %1049 = vmatprep.subr.bf16.mxu0 %v507
    %1050 = vmatpush1.bf16.msra.mxu0 %v506
    %1051 = vmatprep.subr.bf16.mxu0 %v503
    %1052 = vmatpush1.bf16.msra.mxu0 %v502
    %1053 = vmatprep.subr.bf16.mxu0 %v499
    %1054 = vmatpush1.bf16.msra.mxu0 %v498
    %1055 = vmatprep.subr.bf16.mxu0 %v495
    %1056 = vmatpush1.bf16.msra.mxu0 %v494
    %1057 = vmatprep.subr.bf16.mxu0 %v491
    %1058 = vmatpush1.bf16.msra.mxu0 %v490
    %1059 = vmatprep.subr.bf16.mxu0 %v487
    %1060 = vmatpush1.bf16.msra.mxu0 %v486
    %1061 = vmatprep.subr.bf16.mxu0 %v483
    %1062 = vmatpush1.bf16.msra.mxu0 %v482
    %1063 = vmatprep.subr.bf16.mxu0 0
    %1064 = vmatpush2.bf16.msra.mxu0 0
    %1065 = vmatprep.subr.bf16.mxu0 0
    %1066 = vmatpush2.bf16.msra.mxu0 0
    %1067 = vmatprep.subr.bf16.mxu0 0
    %1068 = vmatpush2.bf16.msra.mxu0 0
    %1069 = vmatprep.subr.bf16.mxu0 0
    %1070 = vmatpush2.bf16.msra.mxu0 0
    %1071 = vmatprep.subr.bf16.mxu0 0
    %1072 = vmatpush2.bf16.msra.mxu0 0
    %1073 = vmatprep.subr.bf16.mxu0 0
    %1074 = vmatpush2.bf16.msra.mxu0 0
    %1075 = vmatprep.subr.bf16.mxu0 0
    %1076 = vmatpush2.bf16.msra.mxu0 0
    %1077 = vmatprep.subr.bf16.mxu0 0
    %1078 = vmatpush2.bf16.msra.mxu0 0
    %1079 = vmatprep.mubr.bf16.mxu0 0
    %1080 = vmatmul.mubr.bf16.gmra.mxu0 %v1045
    %v1081 = vpop.f32.mrf.mxu0
    %v1082 = vadd.f32 0.0, %v1081
    %v1083 = vpop.f32.mrf.mxu0
    %v1084 = vadd.f32 0.0, %v1083
    %v1085 = vpop.f32.mrf.mxu0
    %v1086 = vpop.f32.mrf.mxu0
    %1087 = vdwg.mxu0
    %1088 = vmatprep.subr.bf16.mxu0 %v513
    %1089 = vmatpush1.bf16.msra.mxu0 %v512
    %1090 = vmatprep.subr.bf16.mxu0 %v509
    %1091 = vmatpush1.bf16.msra.mxu0 %v508
    %1092 = vmatprep.subr.bf16.mxu0 %v505
    %1093 = vmatpush1.bf16.msra.mxu0 %v504
    %1094 = vmatprep.subr.bf16.mxu0 %v501
    %1095 = vmatpush1.bf16.msra.mxu0 %v500
    %1096 = vmatprep.subr.bf16.mxu0 %v497
    %1097 = vmatpush1.bf16.msra.mxu0 %v496
    %1098 = vmatprep.subr.bf16.mxu0 %v493
    %1099 = vmatpush1.bf16.msra.mxu0 %v492
    %1100 = vmatprep.subr.bf16.mxu0 %v489
    %1101 = vmatpush1.bf16.msra.mxu0 %v488
    %1102 = vmatprep.subr.bf16.mxu0 %v485
    %1103 = vmatpush1.bf16.msra.mxu0 %v484
    %1104 = vmatprep.subr.bf16.mxu0 0
    %1105 = vmatpush2.bf16.msra.mxu0 0
    %1106 = vmatprep.subr.bf16.mxu0 0
    %1107 = vmatpush2.bf16.msra.mxu0 0
    %1108 = vmatprep.subr.bf16.mxu0 0
    %1109 = vmatpush2.bf16.msra.mxu0 0
    %1110 = vmatprep.subr.bf16.mxu0 0
    %1111 = vmatpush2.bf16.msra.mxu0 0
    %1112 = vmatprep.subr.bf16.mxu0 0
    %1113 = vmatpush2.bf16.msra.mxu0 0
    %1114 = vmatprep.subr.bf16.mxu0 0
    %1115 = vmatpush2.bf16.msra.mxu0 0
    %1116 = vmatprep.subr.bf16.mxu0 0
    %1117 = vmatpush2.bf16.msra.mxu0 0
    %1118 = vmatprep.subr.bf16.mxu0 0
    %1119 = vmatpush2.bf16.msra.mxu0 0
    %1120 = vmatprep.mubr.bf16.mxu0 0
    %1121 = vmatmul.mubr.bf16.gmra.mxu0 %v1045
    %v1122 = vpop.f32.mrf.mxu0
    %v1123 = vadd.f32 0.0, %v1122
    %v1124 = vpop.f32.mrf.mxu0
    %v1125 = vadd.f32 0.0, %v1124
    %v1126 = vpop.f32.mrf.mxu0
    %v1127 = vpop.f32.mrf.mxu0
    %1128 = vdwg.mxu0
    %v1133 = vrot.slane %v1082, 4
    %v1134 = vrot.slane %v1084, 4
    %v1135 = vrot.slane %v1123, 4
    %v1136 = vrot.slane %v1125, 4
    %v1141 = vadd.f32 %v350, %v1133
    %v1142 = vadd.f32 %v351, %v1134
    %v1143 = vadd.f32 %v352, %v1135
    %v1144 = vadd.f32 %v353, %v1136
    %v1145 = vxor.u32 %v1141, 2147483648
    %v1146 = vmul.f32 %v1145, 1.442695
    %v1147 = vpow.pop %v1146
    %v1148 = vadd.f32 %v1147, 1.0
    %v1149 = vrcp.pop %v1148
    %v1150 = vmul.f32 1.0, %v1149
    %v1151 = vxor.u32 %v1142, 2147483648
    %v1152 = vmul.f32 %v1151, 1.442695
    %v1153 = vpow.pop %v1152
    %v1154 = vadd.f32 %v1153, 1.0
    %v1155 = vrcp.pop %v1154
    %v1156 = vmul.f32 1.0, %v1155
    %v1157 = vtanh.pop %v1143
    %v1158 = vxor.u32 %v1144, 2147483648
    %v1159 = vmul.f32 %v1158, 1.442695
    %v1160 = vpow.pop %v1159
    %v1161 = vadd.f32 %v1160, 1.0
    %v1162 = vrcp.pop %v1161
    %v1163 = vmul.f32 1.0, %v1162
    %v1165 = vrot.slane %v1038, 7
    %v1167 = vmul.f32 %v1156, %v1165
    %v1168 = vmul.f32 %v1150, %v1157
    %v1169 = vadd.f32 %v1167, %v1168
    %v1170 = vtanh.pop %v1169
    %v1171 = vmul.f32 %v1163, %v1170
    %v1172 = vpack.c.bf16 %v1171, %v1171
    %v1174 = vrot.slane %v1172, 2
    %1176 = vmatprep.subr.bf16.mxu0 %v511
    %1177 = vmatpush1.bf16.msra.mxu0 %v510
    %1178 = vmatprep.subr.bf16.mxu0 %v507
    %1179 = vmatpush1.bf16.msra.mxu0 %v506
    %1180 = vmatprep.subr.bf16.mxu0 %v503
    %1181 = vmatpush1.bf16.msra.mxu0 %v502
    %1182 = vmatprep.subr.bf16.mxu0 %v499
    %1183 = vmatpush1.bf16.msra.mxu0 %v498
    %1184 = vmatprep.subr.bf16.mxu0 %v495
    %1185 = vmatpush1.bf16.msra.mxu0 %v494
    %1186 = vmatprep.subr.bf16.mxu0 %v491
    %1187 = vmatpush1.bf16.msra.mxu0 %v490
    %1188 = vmatprep.subr.bf16.mxu0 %v487
    %1189 = vmatpush1.bf16.msra.mxu0 %v486
    %1190 = vmatprep.subr.bf16.mxu0 %v483
    %1191 = vmatpush1.bf16.msra.mxu0 %v482
    %1192 = vmatprep.subr.bf16.mxu0 0
    %1193 = vmatpush2.bf16.msra.mxu0 0
    %1194 = vmatprep.subr.bf16.mxu0 0
    %1195 = vmatpush2.bf16.msra.mxu0 0
    %1196 = vmatprep.subr.bf16.mxu0 0
    %1197 = vmatpush2.bf16.msra.mxu0 0
    %1198 = vmatprep.subr.bf16.mxu0 0
    %1199 = vmatpush2.bf16.msra.mxu0 0
    %1200 = vmatprep.subr.bf16.mxu0 0
    %1201 = vmatpush2.bf16.msra.mxu0 0
    %1202 = vmatprep.subr.bf16.mxu0 0
    %1203 = vmatpush2.bf16.msra.mxu0 0
    %1204 = vmatprep.subr.bf16.mxu0 0
    %1205 = vmatpush2.bf16.msra.mxu0 0
    %1206 = vmatprep.subr.bf16.mxu0 0
    %1207 = vmatpush2.bf16.msra.mxu0 0
    %1208 = vmatprep.mubr.bf16.mxu0 0
    %1209 = vmatmul.mubr.bf16.gmra.mxu0 %v1174
    %v1210 = vpop.f32.mrf.mxu0
    %v1211 = vadd.f32 0.0, %v1210
    %v1212 = vpop.f32.mrf.mxu0
    %v1213 = vadd.f32 0.0, %v1212
    %v1214 = vpop.f32.mrf.mxu0
    %v1215 = vpop.f32.mrf.mxu0
    %1216 = vdwg.mxu0
    %1217 = vmatprep.subr.bf16.mxu0 %v513
    %1218 = vmatpush1.bf16.msra.mxu0 %v512
    %1219 = vmatprep.subr.bf16.mxu0 %v509
    %1220 = vmatpush1.bf16.msra.mxu0 %v508
    %1221 = vmatprep.subr.bf16.mxu0 %v505
    %1222 = vmatpush1.bf16.msra.mxu0 %v504
    %1223 = vmatprep.subr.bf16.mxu0 %v501
    %1224 = vmatpush1.bf16.msra.mxu0 %v500
    %1225 = vmatprep.subr.bf16.mxu0 %v497
    %1226 = vmatpush1.bf16.msra.mxu0 %v496
    %1227 = vmatprep.subr.bf16.mxu0 %v493
    %1228 = vmatpush1.bf16.msra.mxu0 %v492
    %1229 = vmatprep.subr.bf16.mxu0 %v489
    %1230 = vmatpush1.bf16.msra.mxu0 %v488
    %1231 = vmatprep.subr.bf16.mxu0 %v485
    %1232 = vmatpush1.bf16.msra.mxu0 %v484
    %1233 = vmatprep.subr.bf16.mxu0 0
    %1234 = vmatpush2.bf16.msra.mxu0 0
    %1235 = vmatprep.subr.bf16.mxu0 0
    %1236 = vmatpush2.bf16.msra.mxu0 0
    %1237 = vmatprep.subr.bf16.mxu0 0
    %1238 = vmatpush2.bf16.msra.mxu0 0
    %1239 = vmatprep.subr.bf16.mxu0 0
    %1240 = vmatpush2.bf16.msra.mxu0 0
    %1241 = vmatprep.subr.bf16.mxu0 0
    %1242 = vmatpush2.bf16.msra.mxu0 0
    %1243 = vmatprep.subr.bf16.mxu0 0
    %1244 = vmatpush2.bf16.msra.mxu0 0
    %1245 = vmatprep.subr.bf16.mxu0 0
    %1246 = vmatpush2.bf16.msra.mxu0 0
    %1247 = vmatprep.subr.bf16.mxu0 0
    %1248 = vmatpush2.bf16.msra.mxu0 0
    %1249 = vmatprep.mubr.bf16.mxu0 0
    %1250 = vmatmul.mubr.bf16.gmra.mxu0 %v1174
    %v1251 = vpop.f32.mrf.mxu0
    %v1252 = vadd.f32 0.0, %v1251
    %v1253 = vpop.f32.mrf.mxu0
    %v1254 = vadd.f32 0.0, %v1253
    %v1255 = vpop.f32.mrf.mxu0
    %v1256 = vpop.f32.mrf.mxu0
    %1257 = vdwg.mxu0
    %v1262 = vrot.slane %v1211, 3
    %v1263 = vrot.slane %v1213, 3
    %v1264 = vrot.slane %v1252, 3
    %v1265 = vrot.slane %v1254, 3
    %v1270 = vadd.f32 %v350, %v1262
    %v1271 = vadd.f32 %v351, %v1263
    %v1272 = vadd.f32 %v352, %v1264
    %v1273 = vadd.f32 %v353, %v1265
    %v1274 = vxor.u32 %v1270, 2147483648
    %v1275 = vmul.f32 %v1274, 1.442695
    %v1276 = vpow.pop %v1275
    %v1277 = vadd.f32 %v1276, 1.0
    %v1278 = vrcp.pop %v1277
    %v1279 = vmul.f32 1.0, %v1278
    %v1280 = vxor.u32 %v1271, 2147483648
    %v1281 = vmul.f32 %v1280, 1.442695
    %v1282 = vpow.pop %v1281
    %v1283 = vadd.f32 %v1282, 1.0
    %v1284 = vrcp.pop %v1283
    %v1285 = vmul.f32 1.0, %v1284
    %v1286 = vtanh.pop %v1272
    %v1287 = vxor.u32 %v1273, 2147483648
    %v1288 = vmul.f32 %v1287, 1.442695
    %v1289 = vpow.pop %v1288
    %v1290 = vadd.f32 %v1289, 1.0
    %v1291 = vrcp.pop %v1290
    %v1292 = vmul.f32 1.0, %v1291
    %v1294 = vrot.slane %v1169, 7
    %v1296 = vmul.f32 %v1285, %v1294
    %v1297 = vmul.f32 %v1279, %v1286
    %v1298 = vadd.f32 %v1296, %v1297
    %v1299 = vtanh.pop %v1298
    %v1300 = vmul.f32 %v1292, %v1299
    %v1301 = vpack.c.bf16 %v1300, %v1300
    %v1303 = vshrl.u32 %v1301, 16
    %v1305 = vrot.slane %v1303, 2
    %1307 = vmatprep.subr.bf16.mxu0 %v511
    %1308 = vmatpush1.bf16.msra.mxu0 %v510
    %1309 = vmatprep.subr.bf16.mxu0 %v507
    %1310 = vmatpush1.bf16.msra.mxu0 %v506
    %1311 = vmatprep.subr.bf16.mxu0 %v503
    %1312 = vmatpush1.bf16.msra.mxu0 %v502
    %1313 = vmatprep.subr.bf16.mxu0 %v499
    %1314 = vmatpush1.bf16.msra.mxu0 %v498
    %1315 = vmatprep.subr.bf16.mxu0 %v495
    %1316 = vmatpush1.bf16.msra.mxu0 %v494
    %1317 = vmatprep.subr.bf16.mxu0 %v491
    %1318 = vmatpush1.bf16.msra.mxu0 %v490
    %1319 = vmatprep.subr.bf16.mxu0 %v487
    %1320 = vmatpush1.bf16.msra.mxu0 %v486
    %1321 = vmatprep.subr.bf16.mxu0 %v483
    %1322 = vmatpush1.bf16.msra.mxu0 %v482
    %1323 = vmatprep.subr.bf16.mxu0 0
    %1324 = vmatpush2.bf16.msra.mxu0 0
    %1325 = vmatprep.subr.bf16.mxu0 0
    %1326 = vmatpush2.bf16.msra.mxu0 0
    %1327 = vmatprep.subr.bf16.mxu0 0
    %1328 = vmatpush2.bf16.msra.mxu0 0
    %1329 = vmatprep.subr.bf16.mxu0 0
    %1330 = vmatpush2.bf16.msra.mxu0 0
    %1331 = vmatprep.subr.bf16.mxu0 0
    %1332 = vmatpush2.bf16.msra.mxu0 0
    %1333 = vmatprep.subr.bf16.mxu0 0
    %1334 = vmatpush2.bf16.msra.mxu0 0
    %1335 = vmatprep.subr.bf16.mxu0 0
    %1336 = vmatpush2.bf16.msra.mxu0 0
    %1337 = vmatprep.subr.bf16.mxu0 0
    %1338 = vmatpush2.bf16.msra.mxu0 0
    %1339 = vmatprep.mubr.bf16.mxu0 0
    %1340 = vmatmul.mubr.bf16.gmra.mxu0 %v1305
    %v1341 = vpop.f32.mrf.mxu0
    %v1342 = vadd.f32 0.0, %v1341
    %v1343 = vpop.f32.mrf.mxu0
    %v1344 = vadd.f32 0.0, %v1343
    %v1345 = vpop.f32.mrf.mxu0
    %v1346 = vpop.f32.mrf.mxu0
    %1347 = vdwg.mxu0
    %1348 = vmatprep.subr.bf16.mxu0 %v513
    %1349 = vmatpush1.bf16.msra.mxu0 %v512
    %1350 = vmatprep.subr.bf16.mxu0 %v509
    %1351 = vmatpush1.bf16.msra.mxu0 %v508
    %1352 = vmatprep.subr.bf16.mxu0 %v505
    %1353 = vmatpush1.bf16.msra.mxu0 %v504
    %1354 = vmatprep.subr.bf16.mxu0 %v501
    %1355 = vmatpush1.bf16.msra.mxu0 %v500
    %1356 = vmatprep.subr.bf16.mxu0 %v497
    %1357 = vmatpush1.bf16.msra.mxu0 %v496
    %1358 = vmatprep.subr.bf16.mxu0 %v493
    %1359 = vmatpush1.bf16.msra.mxu0 %v492
    %1360 = vmatprep.subr.bf16.mxu0 %v489
    %1361 = vmatpush1.bf16.msra.mxu0 %v488
    %1362 = vmatprep.subr.bf16.mxu0 %v485
    %1363 = vmatpush1.bf16.msra.mxu0 %v484
    %1364 = vmatprep.subr.bf16.mxu0 0
    %1365 = vmatpush2.bf16.msra.mxu0 0
    %1366 = vmatprep.subr.bf16.mxu0 0
    %1367 = vmatpush2.bf16.msra.mxu0 0
    %1368 = vmatprep.subr.bf16.mxu0 0
    %1369 = vmatpush2.bf16.msra.mxu0 0
    %1370 = vmatprep.subr.bf16.mxu0 0
    %1371 = vmatpush2.bf16.msra.mxu0 0
    %1372 = vmatprep.subr.bf16.mxu0 0
    %1373 = vmatpush2.bf16.msra.mxu0 0
    %1374 = vmatprep.subr.bf16.mxu0 0
    %1375 = vmatpush2.bf16.msra.mxu0 0
    %1376 = vmatprep.subr.bf16.mxu0 0
    %1377 = vmatpush2.bf16.msra.mxu0 0
    %1378 = vmatprep.subr.bf16.mxu0 0
    %1379 = vmatpush2.bf16.msra.mxu0 0
    %1380 = vmatprep.mubr.bf16.mxu0 0
    %1381 = vmatmul.mubr.bf16.gmra.mxu0 %v1305
    %v1382 = vpop.f32.mrf.mxu0
    %v1383 = vadd.f32 0.0, %v1382
    %v1384 = vpop.f32.mrf.mxu0
    %v1385 = vadd.f32 0.0, %v1384
    %v1386 = vpop.f32.mrf.mxu0
    %v1387 = vpop.f32.mrf.mxu0
    %1388 = vdwg.mxu0
    %v1393 = vrot.slane %v1342, 2
    %v1394 = vrot.slane %v1344, 2
    %v1395 = vrot.slane %v1383, 2
    %v1396 = vrot.slane %v1385, 2
    %v1401 = vadd.f32 %v350, %v1393
    %v1402 = vadd.f32 %v351, %v1394
    %v1403 = vadd.f32 %v352, %v1395
    %v1404 = vadd.f32 %v353, %v1396
    %v1405 = vxor.u32 %v1401, 2147483648
    %v1406 = vmul.f32 %v1405, 1.442695
    %v1407 = vpow.pop %v1406
    %v1408 = vadd.f32 %v1407, 1.0
    %v1409 = vrcp.pop %v1408
    %v1410 = vmul.f32 1.0, %v1409
    %v1411 = vxor.u32 %v1402, 2147483648
    %v1412 = vmul.f32 %v1411, 1.442695
    %v1413 = vpow.pop %v1412
    %v1414 = vadd.f32 %v1413, 1.0
    %v1415 = vrcp.pop %v1414
    %v1416 = vmul.f32 1.0, %v1415
    %v1417 = vtanh.pop %v1403
    %v1418 = vxor.u32 %v1404, 2147483648
    %v1419 = vmul.f32 %v1418, 1.442695
    %v1420 = vpow.pop %v1419
    %v1421 = vadd.f32 %v1420, 1.0
    %v1422 = vrcp.pop %v1421
    %v1423 = vmul.f32 1.0, %v1422
    %v1425 = vrot.slane %v1298, 7
    %v1427 = vmul.f32 %v1416, %v1425
    %v1428 = vmul.f32 %v1410, %v1417
    %v1429 = vadd.f32 %v1427, %v1428
    %v1430 = vtanh.pop %v1429
    %v1431 = vmul.f32 %v1423, %v1430
    %v1432 = vpack.c.bf16 %v1431, %v1431
    %v1434 = vrot.slane %v1432, 3
    %1436 = vmatprep.subr.bf16.mxu0 %v511
    %1437 = vmatpush1.bf16.msra.mxu0 %v510
    %1438 = vmatprep.subr.bf16.mxu0 %v507
    %1439 = vmatpush1.bf16.msra.mxu0 %v506
    %1440 = vmatprep.subr.bf16.mxu0 %v503
    %1441 = vmatpush1.bf16.msra.mxu0 %v502
    %1442 = vmatprep.subr.bf16.mxu0 %v499
    %1443 = vmatpush1.bf16.msra.mxu0 %v498
    %1444 = vmatprep.subr.bf16.mxu0 %v495
    %1445 = vmatpush1.bf16.msra.mxu0 %v494
    %1446 = vmatprep.subr.bf16.mxu0 %v491
    %1447 = vmatpush1.bf16.msra.mxu0 %v490
    %1448 = vmatprep.subr.bf16.mxu0 %v487
    %1449 = vmatpush1.bf16.msra.mxu0 %v486
    %1450 = vmatprep.subr.bf16.mxu0 %v483
    %1451 = vmatpush1.bf16.msra.mxu0 %v482
    %1452 = vmatprep.subr.bf16.mxu0 0
    %1453 = vmatpush2.bf16.msra.mxu0 0
    %1454 = vmatprep.subr.bf16.mxu0 0
    %1455 = vmatpush2.bf16.msra.mxu0 0
    %1456 = vmatprep.subr.bf16.mxu0 0
    %1457 = vmatpush2.bf16.msra.mxu0 0
    %1458 = vmatprep.subr.bf16.mxu0 0
    %1459 = vmatpush2.bf16.msra.mxu0 0
    %1460 = vmatprep.subr.bf16.mxu0 0
    %1461 = vmatpush2.bf16.msra.mxu0 0
    %1462 = vmatprep.subr.bf16.mxu0 0
    %1463 = vmatpush2.bf16.msra.mxu0 0
    %1464 = vmatprep.subr.bf16.mxu0 0
    %1465 = vmatpush2.bf16.msra.mxu0 0
    %1466 = vmatprep.subr.bf16.mxu0 0
    %1467 = vmatpush2.bf16.msra.mxu0 0
    %1468 = vmatprep.mubr.bf16.mxu0 0
    %1469 = vmatmul.mubr.bf16.gmra.mxu0 %v1434
    %v1470 = vpop.f32.mrf.mxu0
    %v1471 = vadd.f32 0.0, %v1470
    %v1472 = vpop.f32.mrf.mxu0
    %v1473 = vadd.f32 0.0, %v1472
    %v1474 = vpop.f32.mrf.mxu0
    %v1475 = vpop.f32.mrf.mxu0
    %1476 = vdwg.mxu0
    %1477 = vmatprep.subr.bf16.mxu0 %v513
    %1478 = vmatpush1.bf16.msra.mxu0 %v512
    %1479 = vmatprep.subr.bf16.mxu0 %v509
    %1480 = vmatpush1.bf16.msra.mxu0 %v508
    %1481 = vmatprep.subr.bf16.mxu0 %v505
    %1482 = vmatpush1.bf16.msra.mxu0 %v504
    %1483 = vmatprep.subr.bf16.mxu0 %v501
    %1484 = vmatpush1.bf16.msra.mxu0 %v500
    %1485 = vmatprep.subr.bf16.mxu0 %v497
    %1486 = vmatpush1.bf16.msra.mxu0 %v496
    %1487 = vmatprep.subr.bf16.mxu0 %v493
    %1488 = vmatpush1.bf16.msra.mxu0 %v492
    %1489 = vmatprep.subr.bf16.mxu0 %v489
    %1490 = vmatpush1.bf16.msra.mxu0 %v488
    %1491 = vmatprep.subr.bf16.mxu0 %v485
    %1492 = vmatpush1.bf16.msra.mxu0 %v484
    %1493 = vmatprep.subr.bf16.mxu0 0
    %1494 = vmatpush2.bf16.msra.mxu0 0
    %1495 = vmatprep.subr.bf16.mxu0 0
    %1496 = vmatpush2.bf16.msra.mxu0 0
    %1497 = vmatprep.subr.bf16.mxu0 0
    %1498 = vmatpush2.bf16.msra.mxu0 0
    %1499 = vmatprep.subr.bf16.mxu0 0
    %1500 = vmatpush2.bf16.msra.mxu0 0
    %1501 = vmatprep.subr.bf16.mxu0 0
    %1502 = vmatpush2.bf16.msra.mxu0 0
    %1503 = vmatprep.subr.bf16.mxu0 0
    %1504 = vmatpush2.bf16.msra.mxu0 0
    %1505 = vmatprep.subr.bf16.mxu0 0
    %1506 = vmatpush2.bf16.msra.mxu0 0
    %1507 = vmatprep.subr.bf16.mxu0 0
    %1508 = vmatpush2.bf16.msra.mxu0 0
    %1509 = vmatprep.mubr.bf16.mxu0 0
    %1510 = vmatmul.mubr.bf16.gmra.mxu0 %v1434
    %v1511 = vpop.f32.mrf.mxu0
    %v1512 = vadd.f32 0.0, %v1511
    %v1513 = vpop.f32.mrf.mxu0
    %v1514 = vadd.f32 0.0, %v1513
    %v1515 = vpop.f32.mrf.mxu0
    %v1516 = vpop.f32.mrf.mxu0
    %1517 = vdwg.mxu0
    %v1522 = vrot.slane %v1471, 1
    %v1523 = vrot.slane %v1473, 1
    %v1524 = vrot.slane %v1512, 1
    %v1525 = vrot.slane %v1514, 1
    %v1530 = vadd.f32 %v350, %v1522
    %v1531 = vadd.f32 %v351, %v1523
    %v1532 = vadd.f32 %v352, %v1524
    %v1533 = vadd.f32 %v353, %v1525
    %v1534 = vxor.u32 %v1530, 2147483648
    %v1535 = vmul.f32 %v1534, 1.442695
    %v1536 = vpow.pop %v1535
    %v1537 = vadd.f32 %v1536, 1.0
    %v1538 = vrcp.pop %v1537
    %v1539 = vmul.f32 1.0, %v1538
    %v1540 = vxor.u32 %v1531, 2147483648
    %v1541 = vmul.f32 %v1540, 1.442695
    %v1542 = vpow.pop %v1541
    %v1543 = vadd.f32 %v1542, 1.0
    %v1544 = vrcp.pop %v1543
    %v1545 = vmul.f32 1.0, %v1544
    %v1546 = vtanh.pop %v1532
    %v1547 = vxor.u32 %v1533, 2147483648
    %v1548 = vmul.f32 %v1547, 1.442695
    %v1549 = vpow.pop %v1548
    %v1550 = vadd.f32 %v1549, 1.0
    %v1551 = vrcp.pop %v1550
    %v1552 = vmul.f32 1.0, %v1551
    %v1554 = vrot.slane %v1429, 7
    %v1556 = vmul.f32 %v1545, %v1554
    %v1557 = vmul.f32 %v1539, %v1546
    %v1558 = vadd.f32 %v1556, %v1557
    %v1559 = vtanh.pop %v1558
    %v1560 = vmul.f32 %v1552, %v1559
    %vm1561 = vcmask 1040384
    %v1562 = vsel %vm1561, %v655, %v781
    %vm1563 = vcmask 1041408
    %v1564 = vsel %vm1563, %v1562, %v911
    %vm1565 = vcmask 1042432
    %v1566 = vsel %vm1565, %v1564, %v1040
    %vm1567 = vcmask 1043456
    %v1568 = vsel %vm1567, %v1566, %v1171
    %vm1569 = vcmask 1044480
    %v1570 = vsel %vm1569, %v1568, %v1300
    %vm1571 = vcmask 1045504
    %v1572 = vsel %vm1571, %v1570, %v1431
    %vm1573 = vcmask 1046528
    %v1574 = vsel %vm1573, %v1572, %v1560
    %1575 = vst [vmem:[%s4] sm:$0xff] %v1574
    // Predicated region
    $region26: #{suess_forward.3} parent=1 // pred_check
      _
    $region27: #{suess_forward.3} parent=1 // pred_check_branch
      %1577 = sbr.rel (0) target = $region29
    $region28: #{suess_forward.3} parent=1 // pred_region
      _
    $region29: #{suess_forward.3} parent=1 // pred_fallthru
      _
    // Predicated region
    $region30: #{suess_forward.3} parent=1 // pred_check
      _
    $region31: #{suess_forward.3} parent=1 // pred_check_branch
      %1579 = sbr.rel (0) target = $region33
    $region32: #{suess_forward.3} parent=1 // pred_region
      _
    $region33: #{suess_forward.3} parent=1 // pred_fallthru
      _
    %1580 = vsyncpa [#allocation4], 1
    %1581 = vsyncpa [#allocation6], 1

</llo_original>
